<compile_context>
chip_gen: v6e
topology: v6e:2x2x1
jax: 0.10.0
libtpu: 0.0.40
codegen_flags: <defaults>
</compile_context>

<pallas_src>
import jax
import jax.numpy as jnp
import numpy as np
from jax import lax
from jax.experimental import pallas as pl
from jax.experimental.pallas import tpu as pltpu


# ----------------------------------------------------------------------------
# Fused kernel: conv3x3+BN+ReLU -> conv3x3+BN+ReLU -> conv1x1 (+bias)
# One grid step = `block_batch` images.  Activations are (rows, W*C) lane-dense.
# ----------------------------------------------------------------------------
def m0_fused_kernel(x_ref, w1_ref, s1_ref, w2_ref, s2_ref, w3_ref, b3_ref,
                    o1_ref, o2_ref, lhs1, lhs2):
    # x_ref : (B, H, W*Cin)       bf16 lane-dense input images
    # w1_ref: (3*W*Cin, W*Cmid)   bf16 dy-concatenated banded conv1 weight
    # s1_ref: (1, W*Cmid)         f32 folded BN+bias shift (tiled over W)
    # w2_ref: (3*W*Cmid, W*Cout)  bf16 dy-concatenated banded conv2 weight
    # s2_ref: (1, W*Cout)         f32
    # w3_ref: (W*Cout, W*NCls)    bf16 block-diagonal 1x1 conv weight
    # b3_ref: (1, W*NCls)         f32
    # o1_ref: (B, H, W*Cmid)      f32 x_feat
    # o2_ref: (B, H, W*NCls)      f32 logits
    # lhs1  : (B*H, 3*W*Cin)      bf16 scratch (conv1 vertical-tap im2row)
    # lhs2  : (B*H, 3*W*Cmid)     bf16 scratch (conv2 vertical-tap im2row)
    B, H, WCin = x_ref.shape
    WCmid = o1_ref.shape[2]

    # ---- conv1: build LHS (vertical taps dy = 0,1,2; halo rows are zero) ----
    for b in range(B):
        r0 = b * H
        # dy = 0 : input row h-1  (first output row sees the zero halo)
        lhs1[r0:r0 + 1, 0:WCin] = jnp.zeros((1, WCin), lhs1.dtype)
        lhs1[r0 + 1:r0 + H, 0:WCin] = x_ref[b, 0:H - 1, :]
        # dy = 1 : input row h
        lhs1[r0:r0 + H, WCin:2 * WCin] = x_ref[b, :, :]
        # dy = 2 : input row h+1 (last output row sees the zero halo)
        lhs1[r0:r0 + H - 1, 2 * WCin:3 * WCin] = x_ref[b, 1:H, :]
        lhs1[r0 + H - 1:r0 + H, 2 * WCin:3 * WCin] = jnp.zeros((1, WCin),
                                                               lhs1.dtype)

    # Single large-K matmul; f32 accumulate; f32 epilogue (bias add + ReLU).
    acc1 = jnp.dot(lhs1[...], w1_ref[...], preferred_element_type=jnp.float32)
    h1 = jnp.maximum(acc1 + s1_ref[...], 0.0)          # (B*H, W*Cmid) f32
    h1b = h1.astype(jnp.bfloat16)

    # ---- conv2: write x_feat, build its LHS from h1 --------------------------
    for b in range(B):
        r0 = b * H
        o1_ref[b, :, :] = h1[r0:r0 + H, :]
        lhs2[r0:r0 + 1, 0:WCmid] = jnp.zeros((1, WCmid), lhs2.dtype)
        lhs2[r0 + 1:r0 + H, 0:WCmid] = h1b[r0:r0 + H - 1, :]
        lhs2[r0:r0 + H, WCmid:2 * WCmid] = h1b[r0:r0 + H, :]
        lhs2[r0:r0 + H - 1, 2 * WCmid:3 * WCmid] = h1b[r0 + 1:r0 + H, :]
        lhs2[r0 + H - 1:r0 + H, 2 * WCmid:3 * WCmid] = jnp.zeros((1, WCmid),
                                                                 lhs2.dtype)

    acc2 = jnp.dot(lhs2[...], w2_ref[...], preferred_element_type=jnp.float32)
    x1 = jnp.maximum(acc2 + s2_ref[...], 0.0)          # (B*H, W*Cout) f32

    # ---- 1x1 OutConv (block-diagonal matmul) + bias --------------------------
    logits = jnp.dot(x1.astype(jnp.bfloat16), w3_ref[...],
                     preferred_element_type=jnp.float32) + b3_ref[...]
    for b in range(B):
        o2_ref[b, :, :] = logits[b * H:(b + 1) * H, :]


# ----------------------------------------------------------------------------
# Block-batch heuristic: target M ~ 256 rows, but keep >= 2 grid steps when
# possible so both v7x TensorCores get work ("parallel" grid axis).
# ----------------------------------------------------------------------------
def _pick_block_batch(n, h, target_rows=256):
    b = max(1, min(n, target_rows // max(h, 1)))
    while n % b:
        b -= 1
    while b > 1 and (n // b) < 2:
        b -= 1
        while n % b:
            b -= 1
    return b


# ----------------------------------------------------------------------------
# Pallas wrapper (single fused call)
# ----------------------------------------------------------------------------
def m0_pallas(x, pp, *, block_batch=None, channels_last=False):
    if channels_last:                       # x is already (N, H, W, Cin)
        N, H, W, Cin = x.shape
        x_nhwc = x
    else:                                   # PyTorch NCHW convention
        N, Cin, H, W = x.shape
        x_nhwc = jnp.transpose(x, (0, 2, 3, 1))

    Cmid = pp["s1"].shape[-1] // W
    Cout = pp["s2"].shape[-1] // W
    NCls = pp["b3"].shape[-1] // W

    B = _pick_block_batch(N, H) if block_batch is None else block_batch
    assert N % B == 0

    # lane-dense (N, H, W*Cin), bf16 MXU operand (halves input DMA bytes)
    xl = x_nhwc.reshape(N, H, W * Cin).astype(jnp.bfloat16)

    x_flat, logits_flat = pl.pallas_call(
        m0_fused_kernel,
        out_shape=(
            jax.ShapeDtypeStruct((N, H, W * Cmid), jnp.float32),
            jax.ShapeDtypeStruct((N, H, W * NCls), jnp.float32),
        ),
        grid_spec=pltpu.PrefetchScalarGridSpec(
            num_scalar_prefetch=0,
            grid=(N // B,),
            in_specs=[
                pl.BlockSpec((B, H, W * Cin), lambda n: (n, 0, 0)),
                pl.BlockSpec((3 * W * Cin, W * Cmid), lambda n: (0, 0)),
                pl.BlockSpec((1, W * Cmid), lambda n: (0, 0)),
                pl.BlockSpec((3 * W * Cmid, W * Cout), lambda n: (0, 0)),
                pl.BlockSpec((1, W * Cout), lambda n: (0, 0)),
                pl.BlockSpec((W * Cout, W * NCls), lambda n: (0, 0)),
                pl.BlockSpec((1, W * NCls), lambda n: (0, 0)),
            ],
            out_specs=[
                pl.BlockSpec((B, H, W * Cmid), lambda n: (n, 0, 0)),
                pl.BlockSpec((B, H, W * NCls), lambda n: (n, 0, 0)),
            ],
            scratch_shapes=[
                pltpu.VMEM((B * H, 3 * W * Cin), jnp.bfloat16),
                pltpu.VMEM((B * H, 3 * W * Cmid), jnp.bfloat16),
            ],
        ),
        compiler_params=pltpu.CompilerParams(
            dimension_semantics=("parallel",)),
    )(xl, pp["w1"], pp["s1"], pp["w2"], pp["s2"], pp["w3"], pp["b3"])

    x_feat = x_flat.reshape(N, H, W, Cmid)
    logits = logits_flat.reshape(N, H, W, NCls)
    if not channels_last:
        # match PyTorch's NCHW output convention; at production sizes prefer
        # channels_last=True end-to-end to avoid these extra HBM passes.
        x_feat = jnp.transpose(x_feat, (0, 3, 1, 2))
        logits = jnp.transpose(logits, (0, 3, 1, 2))
    return x_feat, logits


m0_forward = jax.jit(m0_pallas, static_argnames=("block_batch", "channels_last"))


# ----------------------------------------------------------------------------
# Parameter prep: fold BN + bias into weights, build dy-concatenated banded /
# block-diagonal matrices.  Done once, outside the per-call forward.
# ----------------------------------------------------------------------------
def prepare_pallas_params(p, W, eps=1e-5, mxu_dtype=jnp.bfloat16):
    def fold(w, b, gamma, beta, mean, var):
        scale = gamma / jnp.sqrt(var + eps)                 # (Cout,)
        w_f = w * scale[:, None, None, None]                # scale per out-ch
        shift = (b - mean) * scale + beta                   # folded affine
        return w_f, shift

    def banded_cat(w_oihw):
        # (Cout, Cin, 3, 3) -> dy-concatenated banded weight (3*W*Cin, W*Cout).
        # NOTE: ~3/W dense; switch to per-tap dense matmuls (pltpu.roll on the
        # lane axis) instead of scaling this to large W.
        cout, cin = w_oihw.shape[0], w_oihw.shape[1]
        wk = jnp.transpose(w_oihw, (2, 3, 1, 0))            # (ky, kx, Cin, Cout)
        bands = []
        for dy in range(3):
            m = jnp.zeros((W * cin, W * cout), jnp.float32)
            for dx in range(3):
                # w_in = w_out + (dx - 1); out-of-range columns are simply
                # absent -> implicit zero padding along W.
                e = jnp.eye(W, W, k=-(dx - 1), dtype=jnp.float32)
                m = m + jnp.kron(e, wk[dy, dx])
            bands.append(m)                                  # (W*Cin, W*Cout)
        return jnp.concatenate(bands, axis=0)                # (3*W*Cin, W*Cout)

    w1f, s1 = fold(p["w1"], p["b1"], p["g1"], p["be1"], p["m1"], p["v1"])
    w2f, s2 = fold(p["w2"], p["b2"], p["g2"], p["be2"], p["m2"], p["v2"])
    w3 = jnp.transpose(p["w3"][:, :, 0, 0])                  # (Cout, NCls)

    return {
        "w1": banded_cat(w1f).astype(mxu_dtype),
        "s1": jnp.tile(s1, W)[None, :].astype(jnp.float32),
        "w2": banded_cat(w2f).astype(mxu_dtype),
        "s2": jnp.tile(s2, W)[None, :].astype(jnp.float32),
        "w3": jnp.kron(jnp.eye(W, dtype=jnp.float32), w3).astype(mxu_dtype),
        "b3": jnp.tile(p["b3"], W)[None, :].astype(jnp.float32),
    }


# ----------------------------------------------------------------------------
# Deterministic synthetic parameters (PyTorch-layout raw params)
# ----------------------------------------------------------------------------
def make_raw_params(key, in_c, out_c, n_classes, c=32):
    ks = jax.random.split(key, 14)

    def conv_p(k1, k2, cin, cout):
        w = 0.1 * jax.random.normal(k1, (cout, cin, 3, 3), jnp.float32)
        b = 0.05 * jax.random.normal(k2, (cout,), jnp.float32)
        return w, b

    def bn_p(k1, k2, k3, k4, cout):
        g = 1.0 + 0.1 * jax.random.normal(k1, (cout,), jnp.float32)
        be = 0.1 * jax.random.normal(k2, (cout,), jnp.float32)
        m = 0.1 * jax.random.normal(k3, (cout,), jnp.float32)
        v = jax.random.uniform(k4, (cout,), jnp.float32, 0.5, 1.5)
        return g, be, m, v

    p = {}
    p["w1"], p["b1"] = conv_p(ks[0], ks[1], in_c, c)
    p["g1"], p["be1"], p["m1"], p["v1"] = bn_p(ks[2], ks[3], ks[4], ks[5], c)
    p["w2"], p["b2"] = conv_p(ks[6], ks[7], c, out_c)
    p["g2"], p["be2"], p["m2"], p["v2"] = bn_p(ks[8], ks[9], ks[10], ks[11],
                                               out_c)
    p["w3"] = 0.1 * jax.random.normal(ks[12], (n_classes, out_c, 1, 1),
                                      jnp.float32)
    p["b3"] = 0.05 * jax.random.normal(ks[13], (n_classes,), jnp.float32)
    return p


# ----------------------------------------------------------------------------
# Pure-JAX (lax.conv) reference for validation
# ----------------------------------------------------------------------------
def m0_reference(x, p, eps=1e-5):
    def conv3x3(x, w, b):
        y = lax.conv_general_dilated(
            x, w, (1, 1), [(1, 1), (1, 1)],
            dimension_numbers=("NCHW", "OIHW", "NCHW"))
        return y + b[None, :, None, None]

    def bn(x, g, be, m, v):
        s = g / jnp.sqrt(v + eps)
        return x * s[None, :, None, None] + (be - m * s)[None, :, None, None]

    h = jnp.maximum(bn(conv3x3(x, p["w1"], p["b1"]),
                       p["g1"], p["be1"], p["m1"], p["v1"]), 0.0)
    x1 = jnp.maximum(bn(conv3x3(h, p["w2"], p["b2"]),
                        p["g2"], p["be2"], p["m2"], p["v2"]), 0.0)
    logits = lax.conv_general_dilated(
        x1, p["w3"], (1, 1), [(0, 0), (0, 0)],
        dimension_numbers=("NCHW", "OIHW", "NCHW"))
    logits = logits + p["b3"][None, :, None, None]
    return h, logits


if __name__ == "__main__":
    # Small shapes consistent with the module: batch=2, in_channels=4,
    # out_channels=8, n_classes=3, spatial=16x16.
    N, Cin, H, W = 2, 4, 16, 16
    out_channels, n_classes = 8, 3

    key = jax.random.PRNGKey(0)
    kx, kp = jax.random.split(key)
    x = jax.random.normal(kx, (N, Cin, H, W), jnp.float32)

    raw = make_raw_params(kp, Cin, out_channels, n_classes)
    pp = prepare_pallas_params(raw, W)
    jax.block_until_ready(pp)

    x_feat, logits = m0_forward(x, pp)
    jax.block_until_ready((x_feat, logits))

    # validate against pure-JAX reference (bf16 MXU operands, f32 accumulation
    # -> relaxed tolerance)
    x_ref, logits_ref = m0_reference(x, raw)
    np.testing.assert_allclose(np.asarray(x_feat), np.asarray(x_ref),
                               rtol=2e-2, atol=2e-2)
    np.testing.assert_allclose(np.asarray(logits), np.asarray(logits_ref),
                               rtol=2e-2, atol=2e-2)

    assert x_feat.shape == (N, 32, H, W)
    assert logits.shape == (N, n_classes, H, W)
    print("KERNEL_OK")
</pallas_src>

<mosaic_0001>
module attributes {stable_mosaic.version = 11 : i64} {
  func.func @m0_fused_kernel(%arg0: i32, %arg1: memref<1x16x64xbf16, #tpu.memory_space<vmem>>, %arg2: memref<192x512xbf16, #tpu.memory_space<vmem>>, %arg3: memref<1x512xf32, #tpu.memory_space<vmem>>, %arg4: memref<1536x128xbf16, #tpu.memory_space<vmem>>, %arg5: memref<1x128xf32, #tpu.memory_space<vmem>>, %arg6: memref<128x48xbf16, #tpu.memory_space<vmem>>, %arg7: memref<1x48xf32, #tpu.memory_space<vmem>>, %arg8: memref<1x16x512xf32, #tpu.memory_space<vmem>>, %arg9: memref<1x16x48xf32, #tpu.memory_space<vmem>>, %arg10: memref<16x192xbf16, #tpu.memory_space<vmem>>, %arg11: memref<16x1536xbf16, #tpu.memory_space<vmem>>) attributes {dimension_semantics = [#tpu.dimension_semantics<parallel>], iteration_bounds = array<i64: 2>, scalar_prefetch = 0 : i64, scratch_operands = 2 : i64, tpu.core_type = #tpu.core_type<tc>, window_params = [{transform_indices = @transform_0, window_bounds = array<i64: 1, 16, 64>}, {pipeline_mode = #tpu.pipeline_mode<synchronous>, transform_indices = @transform_1, window_bounds = array<i64: 192, 512>}, {pipeline_mode = #tpu.pipeline_mode<synchronous>, transform_indices = @transform_2, window_bounds = array<i64: 1, 512>}, {pipeline_mode = #tpu.pipeline_mode<synchronous>, transform_indices = @transform_3, window_bounds = array<i64: 1536, 128>}, {pipeline_mode = #tpu.pipeline_mode<synchronous>, transform_indices = @transform_4, window_bounds = array<i64: 1, 128>}, {pipeline_mode = #tpu.pipeline_mode<synchronous>, transform_indices = @transform_5, window_bounds = array<i64: 128, 48>}, {pipeline_mode = #tpu.pipeline_mode<synchronous>, transform_indices = @transform_6, window_bounds = array<i64: 1, 48>}, {transform_indices = @transform_7, window_bounds = array<i64: 1, 16, 512>}, {transform_indices = @transform_8, window_bounds = array<i64: 1, 16, 48>}]} {
    %cst = arith.constant 0.000000e+00 : bf16
    %0 = vector.broadcast %cst : bf16 to vector<1x64xbf16>
    %c0 = arith.constant 0 : index
    %c0_0 = arith.constant 0 : index
    %1 = vector.load %arg10[%c0, %c0_0] : memref<16x192xbf16, #tpu.memory_space<vmem>>, vector<1x64xbf16>
    tpu.vector_store %arg10[%c0, %c0_0], %0 {strides = array<i32>} : memref<16x192xbf16, #tpu.memory_space<vmem>>, vector<1x64xbf16>,
    %c0_1 = arith.constant 0 : index
    %c0_2 = arith.constant 0 : index
    %c0_3 = arith.constant 0 : index
    %2 = vector.load %arg1[%c0_1, %c0_2, %c0_3] : memref<1x16x64xbf16, #tpu.memory_space<vmem>>, vector<1x15x64xbf16>
    %3 = vector.shape_cast %2 : vector<1x15x64xbf16> to vector<15x64xbf16>
    %c1 = arith.constant 1 : index
    %c0_4 = arith.constant 0 : index
    %4 = vector.load %arg10[%c1, %c0_4] : memref<16x192xbf16, #tpu.memory_space<vmem>>, vector<15x64xbf16>
    tpu.vector_store %arg10[%c1, %c0_4], %3 {strides = array<i32>} : memref<16x192xbf16, #tpu.memory_space<vmem>>, vector<15x64xbf16>,
    %c0_5 = arith.constant 0 : index
    %c0_6 = arith.constant 0 : index
    %c0_7 = arith.constant 0 : index
    %5 = vector.load %arg1[%c0_5, %c0_6, %c0_7] : memref<1x16x64xbf16, #tpu.memory_space<vmem>>, vector<1x16x64xbf16>
    %6 = vector.shape_cast %5 : vector<1x16x64xbf16> to vector<16x64xbf16>
    %c0_8 = arith.constant 0 : index
    %c64 = arith.constant 64 : index
    %7 = vector.load %arg10[%c0_8, %c64] : memref<16x192xbf16, #tpu.memory_space<vmem>>, vector<16x64xbf16>
    tpu.vector_store %arg10[%c0_8, %c64], %6 {strides = array<i32>} : memref<16x192xbf16, #tpu.memory_space<vmem>>, vector<16x64xbf16>,
    %c0_9 = arith.constant 0 : index
    %c1_10 = arith.constant 1 : index
    %c0_11 = arith.constant 0 : index
    %8 = vector.load %arg1[%c0_9, %c1_10, %c0_11] : memref<1x16x64xbf16, #tpu.memory_space<vmem>>, vector<1x15x64xbf16>
    %9 = vector.shape_cast %8 : vector<1x15x64xbf16> to vector<15x64xbf16>
    %c0_12 = arith.constant 0 : index
    %c128 = arith.constant 128 : index
    %10 = vector.load %arg10[%c0_12, %c128] : memref<16x192xbf16, #tpu.memory_space<vmem>>, vector<15x64xbf16>
    tpu.vector_store %arg10[%c0_12, %c128], %9 {strides = array<i32>} : memref<16x192xbf16, #tpu.memory_space<vmem>>, vector<15x64xbf16>,
    %cst_13 = arith.constant 0.000000e+00 : bf16
    %11 = vector.broadcast %cst_13 : bf16 to vector<1x64xbf16>
    %c15 = arith.constant 15 : index
    %c128_14 = arith.constant 128 : index
    %12 = vector.load %arg10[%c15, %c128_14] : memref<16x192xbf16, #tpu.memory_space<vmem>>, vector<1x64xbf16>
    tpu.vector_store %arg10[%c15, %c128_14], %11 {strides = array<i32>} : memref<16x192xbf16, #tpu.memory_space<vmem>>, vector<1x64xbf16>,
    %c0_15 = arith.constant 0 : index
    %c0_16 = arith.constant 0 : index
    %13 = vector.load %arg10[%c0_15, %c0_16] : memref<16x192xbf16, #tpu.memory_space<vmem>>, vector<16x192xbf16>
    %c0_17 = arith.constant 0 : index
    %c0_18 = arith.constant 0 : index
    %14 = vector.load %arg2[%c0_17, %c0_18] : memref<192x512xbf16, #tpu.memory_space<vmem>>, vector<192x512xbf16>
    %cst_19 = arith.constant dense<0.000000e+00> : vector<16x512xf32>
    %15 = tpu.matmul %13, %14, %cst_19 {dimension_numbers = #tpu.dot_dimension_numbers<[1], [0], [0], [1], [0, 0, 1, 1], [], []>} : vector<16x192xbf16>, vector<192x512xbf16>, vector<16x512xf32> -> vector<16x512xf32>
    %c0_20 = arith.constant 0 : index
    %c0_21 = arith.constant 0 : index
    %16 = vector.load %arg3[%c0_20, %c0_21] : memref<1x512xf32, #tpu.memory_space<vmem>>, vector<1x512xf32>
    %17 = vector.broadcast %16 : vector<1x512xf32> to vector<16x512xf32>
    %18 = arith.addf %15, %17 : vector<16x512xf32>
    %cst_22 = arith.constant 0.000000e+00 : f32
    %19 = vector.broadcast %cst_22 : f32 to vector<16x512xf32>
    %20 = arith.maximumf %18, %19 : vector<16x512xf32>
    %21 = arith.truncf %20 : vector<16x512xf32> to vector<16x512xbf16>
    %c0_23 = arith.constant 0 : index
    %c0_24 = arith.constant 0 : index
    %c0_25 = arith.constant 0 : index
    %22 = vector.load %arg8[%c0_23, %c0_24, %c0_25] : memref<1x16x512xf32, #tpu.memory_space<vmem>>, vector<1x16x512xf32>
    %23 = vector.shape_cast %22 : vector<1x16x512xf32> to vector<16x512xf32>
    %24 = vector.shape_cast %20 : vector<16x512xf32> to vector<1x16x512xf32>
    tpu.vector_store %arg8[%c0_23, %c0_24, %c0_25], %24 {strides = array<i32>} : memref<1x16x512xf32, #tpu.memory_space<vmem>>, vector<1x16x512xf32>,
    %cst_26 = arith.constant 0.000000e+00 : bf16
    %25 = vector.broadcast %cst_26 : bf16 to vector<1x512xbf16>
    %c0_27 = arith.constant 0 : index
    %c0_28 = arith.constant 0 : index
    %26 = vector.load %arg11[%c0_27, %c0_28] : memref<16x1536xbf16, #tpu.memory_space<vmem>>, vector<1x512xbf16>
    tpu.vector_store %arg11[%c0_27, %c0_28], %25 {strides = array<i32>} : memref<16x1536xbf16, #tpu.memory_space<vmem>>, vector<1x512xbf16>,
    %27 = vector.extract_strided_slice %21 {offsets = [0, 0], sizes = [15, 512], strides = [1, 1]} : vector<16x512xbf16> to vector<15x512xbf16>
    %c1_29 = arith.constant 1 : index
    %c0_30 = arith.constant 0 : index
    %28 = vector.load %arg11[%c1_29, %c0_30] : memref<16x1536xbf16, #tpu.memory_space<vmem>>, vector<15x512xbf16>
    tpu.vector_store %arg11[%c1_29, %c0_30], %27 {strides = array<i32>} : memref<16x1536xbf16, #tpu.memory_space<vmem>>, vector<15x512xbf16>,
    %c0_31 = arith.constant 0 : index
    %c512 = arith.constant 512 : index
    %29 = vector.load %arg11[%c0_31, %c512] : memref<16x1536xbf16, #tpu.memory_space<vmem>>, vector<16x512xbf16>
    tpu.vector_store %arg11[%c0_31, %c512], %21 {strides = array<i32>} : memref<16x1536xbf16, #tpu.memory_space<vmem>>, vector<16x512xbf16>,
    %30 = vector.extract_strided_slice %21 {offsets = [1, 0], sizes = [15, 512], strides = [1, 1]} : vector<16x512xbf16> to vector<15x512xbf16>
    %c0_32 = arith.constant 0 : index
    %c1024 = arith.constant 1024 : index
    %31 = vector.load %arg11[%c0_32, %c1024] : memref<16x1536xbf16, #tpu.memory_space<vmem>>, vector<15x512xbf16>
    tpu.vector_store %arg11[%c0_32, %c1024], %30 {strides = array<i32>} : memref<16x1536xbf16, #tpu.memory_space<vmem>>, vector<15x512xbf16>,
    %cst_33 = arith.constant 0.000000e+00 : bf16
    %32 = vector.broadcast %cst_33 : bf16 to vector<1x512xbf16>
    %c15_34 = arith.constant 15 : index
    %c1024_35 = arith.constant 1024 : index
    %33 = vector.load %arg11[%c15_34, %c1024_35] : memref<16x1536xbf16, #tpu.memory_space<vmem>>, vector<1x512xbf16>
    tpu.vector_store %arg11[%c15_34, %c1024_35], %32 {strides = array<i32>} : memref<16x1536xbf16, #tpu.memory_space<vmem>>, vector<1x512xbf16>,
    %c0_36 = arith.constant 0 : index
    %c0_37 = arith.constant 0 : index
    %34 = vector.load %arg11[%c0_36, %c0_37] : memref<16x1536xbf16, #tpu.memory_space<vmem>>, vector<16x1536xbf16>
    %c0_38 = arith.constant 0 : index
    %c0_39 = arith.constant 0 : index
    %35 = vector.load %arg4[%c0_38, %c0_39] : memref<1536x128xbf16, #tpu.memory_space<vmem>>, vector<1536x128xbf16>
    %cst_40 = arith.constant dense<0.000000e+00> : vector<16x128xf32>
    %36 = tpu.matmul %34, %35, %cst_40 {dimension_numbers = #tpu.dot_dimension_numbers<[1], [0], [0], [1], [0, 0, 1, 1], [], []>} : vector<16x1536xbf16>, vector<1536x128xbf16>, vector<16x128xf32> -> vector<16x128xf32>
    %c0_41 = arith.constant 0 : index
    %c0_42 = arith.constant 0 : index
    %37 = vector.load %arg5[%c0_41, %c0_42] : memref<1x128xf32, #tpu.memory_space<vmem>>, vector<1x128xf32>
    %38 = vector.broadcast %37 : vector<1x128xf32> to vector<16x128xf32>
    %39 = arith.addf %36, %38 : vector<16x128xf32>
    %cst_43 = arith.constant 0.000000e+00 : f32
    %40 = vector.broadcast %cst_43 : f32 to vector<16x128xf32>
    %41 = arith.maximumf %39, %40 : vector<16x128xf32>
    %42 = arith.truncf %41 : vector<16x128xf32> to vector<16x128xbf16>
    %c0_44 = arith.constant 0 : index
    %c0_45 = arith.constant 0 : index
    %43 = vector.load %arg6[%c0_44, %c0_45] : memref<128x48xbf16, #tpu.memory_space<vmem>>, vector<128x48xbf16>
    %cst_46 = arith.constant dense<0.000000e+00> : vector<16x48xf32>
    %44 = tpu.matmul %42, %43, %cst_46 {dimension_numbers = #tpu.dot_dimension_numbers<[1], [0], [0], [1], [0, 0, 1, 1], [], []>} : vector<16x128xbf16>, vector<128x48xbf16>, vector<16x48xf32> -> vector<16x48xf32>
    %c0_47 = arith.constant 0 : index
    %c0_48 = arith.constant 0 : index
    %45 = vector.load %arg7[%c0_47, %c0_48] : memref<1x48xf32, #tpu.memory_space<vmem>>, vector<1x48xf32>
    %46 = vector.broadcast %45 : vector<1x48xf32> to vector<16x48xf32>
    %47 = arith.addf %44, %46 : vector<16x48xf32>
    %c0_49 = arith.constant 0 : index
    %c0_50 = arith.constant 0 : index
    %c0_51 = arith.constant 0 : index
    %48 = vector.load %arg9[%c0_49, %c0_50, %c0_51] : memref<1x16x48xf32, #tpu.memory_space<vmem>>, vector<1x16x48xf32>
    %49 = vector.shape_cast %48 : vector<1x16x48xf32> to vector<16x48xf32>
    %50 = vector.shape_cast %47 : vector<16x48xf32> to vector<1x16x48xf32>
    tpu.vector_store %arg9[%c0_49, %c0_50, %c0_51], %50 {strides = array<i32>} : memref<1x16x48xf32, #tpu.memory_space<vmem>>, vector<1x16x48xf32>,
    return
  }
  func.func @transform_0(%arg0: i32) -> (i32, i32, i32) {
    %c0_i32 = arith.constant 0 : i32
    %c0_i32_0 = arith.constant 0 : i32
    %c0_i32_1 = arith.constant 0 : i32
    return %arg0, %c0_i32, %c0_i32_0 : i32, i32, i32
  }
  func.func @transform_1(%arg0: i32) -> (i32, i32) {
    %c0_i32 = arith.constant 0 : i32
    %c0_i32_0 = arith.constant 0 : i32
    %c0_i32_1 = arith.constant 0 : i32
    return %c0_i32, %c0_i32_0 : i32, i32
  }
  func.func @transform_2(%arg0: i32) -> (i32, i32) {
    %c0_i32 = arith.constant 0 : i32
    %c0_i32_0 = arith.constant 0 : i32
    %c0_i32_1 = arith.constant 0 : i32
    return %c0_i32, %c0_i32_0 : i32, i32
  }
  func.func @transform_3(%arg0: i32) -> (i32, i32) {
    %c0_i32 = arith.constant 0 : i32
    %c0_i32_0 = arith.constant 0 : i32
    %c0_i32_1 = arith.constant 0 : i32
    return %c0_i32, %c0_i32_0 : i32, i32
  }
  func.func @transform_4(%arg0: i32) -> (i32, i32) {
    %c0_i32 = arith.constant 0 : i32
    %c0_i32_0 = arith.constant 0 : i32
    %c0_i32_1 = arith.constant 0 : i32
    return %c0_i32, %c0_i32_0 : i32, i32
  }
  func.func @transform_5(%arg0: i32) -> (i32, i32) {
    %c0_i32 = arith.constant 0 : i32
    %c0_i32_0 = arith.constant 0 : i32
    %c0_i32_1 = arith.constant 0 : i32
    return %c0_i32, %c0_i32_0 : i32, i32
  }
  func.func @transform_6(%arg0: i32) -> (i32, i32) {
    %c0_i32 = arith.constant 0 : i32
    %c0_i32_0 = arith.constant 0 : i32
    %c0_i32_1 = arith.constant 0 : i32
    return %c0_i32, %c0_i32_0 : i32, i32
  }
  func.func @transform_7(%arg0: i32) -> (i32, i32, i32) {
    %c0_i32 = arith.constant 0 : i32
    %c0_i32_0 = arith.constant 0 : i32
    %c0_i32_1 = arith.constant 0 : i32
    return %arg0, %c0_i32, %c0_i32_0 : i32, i32, i32
  }
  func.func @transform_8(%arg0: i32) -> (i32, i32, i32) {
    %c0_i32 = arith.constant 0 : i32
    %c0_i32_0 = arith.constant 0 : i32
    %c0_i32_1 = arith.constant 0 : i32
    return %arg0, %c0_i32, %c0_i32_0 : i32, i32, i32
  }
}

</mosaic_0001>

<llo_original>
// kernel: m0_pallas.1
$region0: #{m0_pallas.1}
  #allocation0 [shape = 'u32[]', space=smem, size = 0x4, offset = 0x4, fixed_abs, tag = 'smem constant byte address 0x4 - core index']
  #allocation1 [shape = 'u32[144,128]{1,0:T(1,128)}', space=vmem, size = 0x12000, scoped, tag = 'internal scratch']
  #allocation2 [shape = 'bf16[16,192]{1,0:T(8,128)(2,1)}', space=vmem, size = 0x2000, scoped, tag = 'scratch operand']
  #allocation3 [shape = 'bf16[16,1536]{1,0:T(8,128)(2,1)}', space=vmem, size = 0xc000, scoped, tag = 'scratch operand']
  %s0 = inlined_call_operand.vmem [shape: bf16[2,16,64], index: 0, kind: input, shape index: {}]
  %s1 = inlined_call_operand.vmem [shape: bf16[192,512], index: 1, kind: input, shape index: {}]
  %s2 = inlined_call_operand.vmem [shape: f32[1,512], index: 2, kind: input, shape index: {}]
  %s3 = inlined_call_operand.hbm [shape: bf16[1536,128], index: 3, kind: input, shape index: {}]
  %s4 = inlined_call_operand.vmem [shape: f32[1,128], index: 4, kind: input, shape index: {}]
  %s5 = inlined_call_operand.vmem [shape: bf16[128,48], index: 5, kind: input, shape index: {}]
  %s6 = inlined_call_operand.vmem [shape: f32[1,48], index: 6, kind: input, shape index: {}]
  %s7 = inlined_call_operand.vmem [shape: f32[2,16,512], index: 7, kind: output, shape index: {0}]
  %s8 = inlined_call_operand.vmem [shape: f32[2,16,48], index: 8, kind: output, shape index: {1}]
  %9 = xla_tuple %s7, %s8
  %s10 = sld [smem:[#allocation0]]
  $region73: #{m0_pallas.1} parent=0
    _
  %s12 = ssub.s32 1, %s10
  %s13 = scalar_select 0, %s12, %s10
  $region1: #{m0_pallas.1} parent=0
    #allocation4 [shape = 'u8[393216]{0}', space=vmem, size = 0x60000, scoped, tag = 'input window, operand 3, single buffered']
    #allocation5 [shape = 's32[2]{0}', space=sflag, size = 0x8, scoped, tag = 'scoped memory for m0_pallas.1']
    %14 = vsyncpa [#allocation5], 0
    loop: start=0, step=1, limit=4
    $region2: #{m0_pallas.1} parent=1 // loop_pre_header
      _
    $region3: #{m0_pallas.1} parent=1 // loop_header
      %s16 = sphi 0, %s20
      %p17 = scmp.ge.s32.totalorder %s16, 4
      %s26 = sphi 0, %s28
      %s29 = sphi 0, %s26
      %s30 = sphi 0, %s29
      %s46 = sphi 0, %s30
      %s50 = sphi 0, %s50
      %s52 = sphi 0, %s50
      %s53 = sphi 0, %s52
      %s67 = sphi 0, %s53
      %s71 = sphi 0, %s71
      %s73 = sphi 0, %s71
      %s74 = sphi 0, %s73
      %s88 = sphi 0, %s74
      %s92 = sphi 0, %s92
      %s94 = sphi 0, %s92
      %s95 = sphi 0, %s94
      %s109 = sphi 0, %s95
      %s113 = sphi 0, %s113
      %s115 = sphi 0, %s113
      %s116 = sphi 0, %s115
      %s130 = sphi 0, %s116
      %s134 = sphi 0, %s134
      %s136 = sphi 0, %s134
      %s137 = sphi 0, %s136
      %s151 = sphi 0, %s137
      %s155 = sphi 0, %s155
      %s157 = sphi 0, %s155
      %s158 = sphi 0, %s157
      %s172 = sphi 0, %s158
      %s178 = sphi 0, %s180
      %s181 = sphi 0, %s178
      %s182 = sphi 0, %s181
      %s198 = sphi 0, %s182
      %s204 = sphi 0, %s206
      %s207 = sphi 0, %s204
      %s208 = sphi 0, %s207
      %s224 = sphi 0, %s208
    $region4: #{m0_pallas.1} parent=1 // loop_header_branch
      %19 = sbr.rel (%p17) target = $region8
    $region5: #{m0_pallas.1} parent=1 // loop_body
      %s21 = ssub.s32 %s16, 1
      %s22 = ssub.s32 %s16, 2
      %s23 = sadd.s32 %s16, 1
      %s24 = ssub.s32 %s16, %s23
      %p25 = scmp.eq.s32.totalorder %s24, 0
      %s27 = sadd.s32 %s26, 1
      %s28 = scalar_select %p25, %s26, %s27
      %p31 = pneg %p25
      %p32 = scmp.eq.s32.totalorder %s16, 1
      %p33 = por %p31, %p32
      %p34 = scmp.ne.s32.totalorder %s26, %s29
      %p35 = scmp.eq.s32.totalorder %s16, 0
      %p36 = por %p34, %p35
      %p37 = scmp.ne.s32.totalorder %s26, %s29
      %p38 = scmp.eq.s32.totalorder %s21, 1
      %p39 = por %p37, %p38
      %p40 = scmp.ne.s32.totalorder %s29, %s30
      %p41 = scmp.eq.s32.totalorder %s21, 0
      %p42 = por %p40, %p41
      %p43 = scmp.ne.s32.totalorder %s29, %s30
      %p44 = scmp.eq.s32.totalorder %s22, 1
      %p45 = por %p43, %p44
      %p47 = scmp.ne.s32.totalorder %s30, %s46
      %p48 = scmp.eq.s32.totalorder %s22, 0
      %p49 = por %p47, %p48
      %s51 = sadd.s32 %s50, 1
      %p54 = scmp.eq.s32.totalorder %s16, 1
      %p55 = scmp.ne.s32.totalorder %s50, %s52
      %p56 = scmp.eq.s32.totalorder %s16, 0
      %p57 = por %p55, %p56
      %p58 = scmp.ne.s32.totalorder %s50, %s52
      %p59 = scmp.eq.s32.totalorder %s21, 1
      %p60 = por %p58, %p59
      %p61 = scmp.ne.s32.totalorder %s52, %s53
      %p62 = scmp.eq.s32.totalorder %s21, 0
      %p63 = por %p61, %p62
      %p64 = scmp.ne.s32.totalorder %s52, %s53
      %p65 = scmp.eq.s32.totalorder %s22, 1
      %p66 = por %p64, %p65
      %p68 = scmp.ne.s32.totalorder %s53, %s67
      %p69 = scmp.eq.s32.totalorder %s22, 0
      %p70 = por %p68, %p69
      %s72 = sadd.s32 %s71, 1
      %p75 = scmp.eq.s32.totalorder %s16, 1
      %p76 = scmp.ne.s32.totalorder %s71, %s73
      %p77 = scmp.eq.s32.totalorder %s16, 0
      %p78 = por %p76, %p77
      %p79 = scmp.ne.s32.totalorder %s71, %s73
      %p80 = scmp.eq.s32.totalorder %s21, 1
      %p81 = por %p79, %p80
      %p82 = scmp.ne.s32.totalorder %s73, %s74
      %p83 = scmp.eq.s32.totalorder %s21, 0
      %p84 = por %p82, %p83
      %p85 = scmp.ne.s32.totalorder %s73, %s74
      %p86 = scmp.eq.s32.totalorder %s22, 1
      %p87 = por %p85, %p86
      %p89 = scmp.ne.s32.totalorder %s74, %s88
      %p90 = scmp.eq.s32.totalorder %s22, 0
      %p91 = por %p89, %p90
      %s93 = sadd.s32 %s92, 1
      %p96 = scmp.eq.s32.totalorder %s16, 1
      %p97 = scmp.ne.s32.totalorder %s92, %s94
      %p98 = scmp.eq.s32.totalorder %s16, 0
      %p99 = por %p97, %p98
      %p100 = scmp.ne.s32.totalorder %s92, %s94
      %p101 = scmp.eq.s32.totalorder %s21, 1
      %p102 = por %p100, %p101
      %p103 = scmp.ne.s32.totalorder %s94, %s95
      %p104 = scmp.eq.s32.totalorder %s21, 0
      %p105 = por %p103, %p104
      %p106 = scmp.ne.s32.totalorder %s94, %s95
      %p107 = scmp.eq.s32.totalorder %s22, 1
      %p108 = por %p106, %p107
      %p110 = scmp.ne.s32.totalorder %s95, %s109
      %p111 = scmp.eq.s32.totalorder %s22, 0
      %p112 = por %p110, %p111
      %s114 = sadd.s32 %s113, 1
      %p117 = scmp.eq.s32.totalorder %s16, 1
      %p118 = scmp.ne.s32.totalorder %s113, %s115
      %p119 = scmp.eq.s32.totalorder %s16, 0
      %p120 = por %p118, %p119
      %p121 = scmp.ne.s32.totalorder %s113, %s115
      %p122 = scmp.eq.s32.totalorder %s21, 1
      %p123 = por %p121, %p122
      %p124 = scmp.ne.s32.totalorder %s115, %s116
      %p125 = scmp.eq.s32.totalorder %s21, 0
      %p126 = por %p124, %p125
      %p127 = scmp.ne.s32.totalorder %s115, %s116
      %p128 = scmp.eq.s32.totalorder %s22, 1
      %p129 = por %p127, %p128
      %p131 = scmp.ne.s32.totalorder %s116, %s130
      %p132 = scmp.eq.s32.totalorder %s22, 0
      %p133 = por %p131, %p132
      %s135 = sadd.s32 %s134, 1
      %p138 = scmp.eq.s32.totalorder %s16, 1
      %p139 = scmp.ne.s32.totalorder %s134, %s136
      %p140 = scmp.eq.s32.totalorder %s16, 0
      %p141 = por %p139, %p140
      %p142 = scmp.ne.s32.totalorder %s134, %s136
      %p143 = scmp.eq.s32.totalorder %s21, 1
      %p144 = por %p142, %p143
      %p145 = scmp.ne.s32.totalorder %s136, %s137
      %p146 = scmp.eq.s32.totalorder %s21, 0
      %p147 = por %p145, %p146
      %p148 = scmp.ne.s32.totalorder %s136, %s137
      %p149 = scmp.eq.s32.totalorder %s22, 1
      %p150 = por %p148, %p149
      %p152 = scmp.ne.s32.totalorder %s137, %s151
      %p153 = scmp.eq.s32.totalorder %s22, 0
      %p154 = por %p152, %p153
      %s156 = sadd.s32 %s155, 1
      %p159 = scmp.eq.s32.totalorder %s16, 1
      %p160 = scmp.ne.s32.totalorder %s155, %s157
      %p161 = scmp.eq.s32.totalorder %s16, 0
      %p162 = por %p160, %p161
      %p163 = scmp.ne.s32.totalorder %s155, %s157
      %p164 = scmp.eq.s32.totalorder %s21, 1
      %p165 = por %p163, %p164
      %p166 = scmp.ne.s32.totalorder %s157, %s158
      %p167 = scmp.eq.s32.totalorder %s21, 0
      %p168 = por %p166, %p167
      %p169 = scmp.ne.s32.totalorder %s157, %s158
      %p170 = scmp.eq.s32.totalorder %s22, 1
      %p171 = por %p169, %p170
      %p173 = scmp.ne.s32.totalorder %s158, %s172
      %p174 = scmp.eq.s32.totalorder %s22, 0
      %p175 = por %p173, %p174
      %s176 = ssub.s32 %s16, %s23
      %p177 = scmp.eq.s32.totalorder %s176, 0
      %s179 = sadd.s32 %s178, 1
      %s180 = scalar_select %p177, %s178, %s179
      %p183 = pneg %p177
      %p184 = scmp.eq.s32.totalorder %s16, 1
      %p185 = por %p183, %p184
      %p186 = scmp.ne.s32.totalorder %s178, %s181
      %p187 = scmp.eq.s32.totalorder %s16, 0
      %p188 = por %p186, %p187
      %p189 = scmp.ne.s32.totalorder %s178, %s181
      %p190 = scmp.eq.s32.totalorder %s21, 1
      %p191 = por %p189, %p190
      %p192 = scmp.ne.s32.totalorder %s181, %s182
      %p193 = scmp.eq.s32.totalorder %s21, 0
      %p194 = por %p192, %p193
      %p195 = scmp.ne.s32.totalorder %s181, %s182
      %p196 = scmp.eq.s32.totalorder %s22, 1
      %p197 = por %p195, %p196
      %p199 = scmp.ne.s32.totalorder %s182, %s198
      %p200 = scmp.eq.s32.totalorder %s22, 0
      %p201 = por %p199, %p200
      %s202 = ssub.s32 %s16, %s23
      %p203 = scmp.eq.s32.totalorder %s202, 0
      %s205 = sadd.s32 %s204, 1
      %s206 = scalar_select %p203, %s204, %s205
      %p209 = pneg %p203
      %p210 = scmp.eq.s32.totalorder %s16, 1
      %p211 = por %p209, %p210
      %p212 = scmp.ne.s32.totalorder %s204, %s207
      %p213 = scmp.eq.s32.totalorder %s16, 0
      %p214 = por %p212, %p213
      %p215 = scmp.ne.s32.totalorder %s204, %s207
      %p216 = scmp.eq.s32.totalorder %s21, 1
      %p217 = por %p215, %p216
      %p218 = scmp.ne.s32.totalorder %s207, %s208
      %p219 = scmp.eq.s32.totalorder %s21, 0
      %p220 = por %p218, %p219
      %p221 = scmp.ne.s32.totalorder %s207, %s208
      %p222 = scmp.eq.s32.totalorder %s22, 1
      %p223 = por %p221, %p222
      %p225 = scmp.ne.s32.totalorder %s208, %s224
      %p226 = scmp.eq.s32.totalorder %s22, 0
      %p227 = por %p225, %p226
      %p228 = scmp.le.s32.totalorder 1, %s16
      %p229 = scmp.lt.s32.totalorder %s16, 3
      %p230 = pnand %p228, %p229
      %p231 = pneg %p230
      // Predicated region
      $region9: #{m0_pallas.1} parent=5 // pred_check
        _
      $region10: #{m0_pallas.1} parent=5 // pred_check_branch
        %233 = sbr.rel (%p230) target = $region12
      $region11: #{m0_pallas.1} parent=5 // pred_region
        %s234 = ssub.s32 %s16, 1
        // Predicated region
        $region13: #{m0_pallas.1} parent=11 // pred_check
          %p235 = pneg %p63
        $region14: #{m0_pallas.1} parent=11 // pred_check_branch
          %237 = sbr.rel (%p235) target = $region16
        $region15: #{m0_pallas.1} parent=11 // pred_region
          _
        $region16: #{m0_pallas.1} parent=11 // pred_fallthru
          _
        // Predicated region
        $region17: #{m0_pallas.1} parent=11 // pred_check
          %p238 = pneg %p84
        $region18: #{m0_pallas.1} parent=11 // pred_check_branch
          %240 = sbr.rel (%p238) target = $region20
        $region19: #{m0_pallas.1} parent=11 // pred_region
          _
        $region20: #{m0_pallas.1} parent=11 // pred_fallthru
          _
        // Predicated region
        $region21: #{m0_pallas.1} parent=11 // pred_check
          %p241 = pneg %p105
        $region22: #{m0_pallas.1} parent=11 // pred_check_branch
          %243 = sbr.rel (%p241) target = $region24
        $region23: #{m0_pallas.1} parent=11 // pred_region
          %s245 = ssub.s32 12288, 12288
          %246 = vsyncadd [#allocation5], %s245
          %s247 = sshll.u32 [#allocation4], 4
          %s248 = int_to_ptr.vmem [resolvable:$true] %s247
          %253 = dma.hbm_to_vmem [thread:$0]  %s3, 12288, %s248, [#allocation5], 64, 64, 4
        $region24: #{m0_pallas.1} parent=11 // pred_fallthru
          _
        // Predicated region
        $region25: #{m0_pallas.1} parent=11 // pred_check
          %p254 = pneg %p126
        $region26: #{m0_pallas.1} parent=11 // pred_check_branch
          %256 = sbr.rel (%p254) target = $region28
        $region27: #{m0_pallas.1} parent=11 // pred_region
          _
        $region28: #{m0_pallas.1} parent=11 // pred_fallthru
          _
        // Predicated region
        $region29: #{m0_pallas.1} parent=11 // pred_check
          %p257 = pneg %p147
        $region30: #{m0_pallas.1} parent=11 // pred_check_branch
          %259 = sbr.rel (%p257) target = $region32
        $region31: #{m0_pallas.1} parent=11 // pred_region
          _
        $region32: #{m0_pallas.1} parent=11 // pred_fallthru
          _
        // Predicated region
        $region33: #{m0_pallas.1} parent=11 // pred_check
          %p260 = pneg %p168
        $region34: #{m0_pallas.1} parent=11 // pred_check_branch
          %262 = sbr.rel (%p260) target = $region36
        $region35: #{m0_pallas.1} parent=11 // pred_region
          _
        $region36: #{m0_pallas.1} parent=11 // pred_fallthru
          _
      $region12: #{m0_pallas.1} parent=5 // pred_fallthru
        _
      %p263 = scmp.lt.s32.totalorder %s16, 2
      // Predicated region
      $region37: #{m0_pallas.1} parent=5 // pred_check
        %p264 = pneg %p263
      $region38: #{m0_pallas.1} parent=5 // pred_check_branch
        %266 = sbr.rel (%p264) target = $region40
      $region39: #{m0_pallas.1} parent=5 // pred_region
        // Predicated region
        $region41: #{m0_pallas.1} parent=39 // pred_check
          %p267 = pneg %p36
        $region42: #{m0_pallas.1} parent=39 // pred_check_branch
          %269 = sbr.rel (%p267) target = $region44
        $region43: #{m0_pallas.1} parent=39 // pred_region
          %p270 = scmp.lt.s32.totalorder %s16, 1
          %s271 = scalar_select %p270, %s16, 1
          %s272 = smul.addr %s271, 2
          %s273 = smul.addr %s272, 4
          %s274 = scalar_lea.vmem %s0, %s273
        $region44: #{m0_pallas.1} parent=39 // pred_fallthru
          _
      $region40: #{m0_pallas.1} parent=5 // pred_fallthru
        _
      %p275 = scmp.le.s32.totalorder 1, %s16
      %p276 = scmp.lt.s32.totalorder %s16, 3
      %p277 = pnand %p275, %p276
      %p278 = pneg %p277
      // Predicated region
      $region45: #{m0_pallas.1} parent=5 // pred_check
        _
      $region46: #{m0_pallas.1} parent=5 // pred_check_branch
        %280 = sbr.rel (%p277) target = $region48
      $region47: #{m0_pallas.1} parent=5 // pred_region
        %s281 = ssub.s32 %s16, 1
        // Predicated region
        $region49: #{m0_pallas.1} parent=47 // pred_check
          %p282 = pneg %p105
        $region50: #{m0_pallas.1} parent=47 // pred_check_branch
          %284 = sbr.rel (%p282) target = $region52
        $region51: #{m0_pallas.1} parent=47 // pred_region
          %285 = dma.done [#allocation5], 12288
        $region52: #{m0_pallas.1} parent=47 // pred_fallthru
          _
        %p286 = scmp.lt.s32.totalorder %s21, 1
        %s287 = scalar_select %p286, %s21, 1
        %s288 = smul.addr %s287, 2
        %s289 = smul.addr %s288, 4
        %s290 = scalar_lea.vmem %s0, %s289
        %p291 = pneg %p42
        %p292 = pneg %p39
        %p293 = pneg %p63
        %p294 = pneg %p60
        %p295 = pneg %p84
        %p296 = pneg %p81
        %p297 = pneg %p105
        %p298 = pneg %p102
        %p299 = pneg %p126
        %p300 = pneg %p123
        %p301 = pneg %p147
        %p302 = pneg %p144
        %p303 = pneg %p168
        %p304 = pneg %p165
        %p305 = pneg %p194
        %p306 = pneg %p191
        %p307 = scmp.lt.s32.totalorder %s21, 1
        %s308 = scalar_select %p307, %s21, 1
        %s309 = smul.addr %s308, 8
        %s310 = smul.addr %s309, 8
        %s311 = scalar_lea.vmem %s7, %s310
        %p312 = pneg %p220
        %p313 = pneg %p217
        %p314 = scmp.lt.s32.totalorder %s21, 1
        %s315 = scalar_select %p314, %s21, 1
        %s316 = smul.addr %s315, 2
        %s317 = smul.addr %s316, 8
        %s318 = scalar_lea.vmem %s8, %s317
        %p319 = scmp.lt.s32.totalorder %s21, 1
        %s320 = scalar_select %p319, %s21, 1
        %s321 = smul.addr %s320, 2
        %s322 = smul.addr %s321, 4
        %s323 = scalar_lea.vmem %s0, %s322
        %p324 = scmp.lt.s32.totalorder %s21, 1
        %s325 = scalar_select %p324, %s21, 1
        %s326 = smul.addr %s325, 8
        %s327 = smul.addr %s326, 8
        %s328 = scalar_lea.vmem %s7, %s327
        %p329 = scmp.lt.s32.totalorder %s21, 1
        %s330 = scalar_select %p329, %s21, 1
        %s331 = smul.addr %s330, 2
        %s332 = smul.addr %s331, 8
        %s333 = scalar_lea.vmem %s8, %s332
        %vm335 = vcmask 516096
        %vm336 = vsmask.f32 256
        %vm337 = vmand %vm335, %vm336
        %v338 = vld [vmem:[#allocation2] sm:$0x1]
        %v339 = vsel %vm337, 0, %v338
        %340 = vst [vmem:[#allocation2] sm:$0x1] %v339
        %v341 = vld [vmem:[%s323] sm:$0xf]
        %v342 = vld [vmem:[%s323 + $0x4] sm:$0xf]
        %vm343 = vsmask.f32 4368
        %vm344 = vmor %vm336, %vm343
        %v346 = vshrl.u32 %v341, 16
        %v348 = vrot.slane %v346, 7
        %v349 = vshll.u32 %v341, 16
        %v351 = vor.u32 %v348, %v349
        %v352 = vrot.slane %v348, 4
        %v354 = vshrl.u32 %v342, 16
        %v356 = vrot.slane %v354, 7
        %v357 = vshll.u32 %v342, 16
        %v359 = vor.u32 %v356, %v357
        %v360 = vsel %vm344, %v352, %v359
        %vm363 = vcmask 519168
        %vm364 = vsmask.f32 7938
        %vm365 = vmand %vm363, %vm364
        %v366 = vld [vmem:[#allocation2] sm:$0xf]
        %v367 = vsel %vm365, %v351, %v366
        %368 = vst [vmem:[#allocation2] sm:$0xf] %v367
        %vm369 = vcmask 519168
        %370 = vst.msk [vmem:[#allocation2 + $0x8] sm:$0xf] %vm369, %v360
        %v371 = vld [vmem:[%s323] sm:$0xf]
        %v372 = vld [vmem:[%s323 + $0x4] sm:$0xf]
        %375 = vrot.lane.b32.xlu0 %v371, 64
        %v376 = vpop.permute.xlu0 %375
        %377 = vrot.lane.b32.xlu0 %v372, 64
        %v378 = vpop.permute.xlu0 %377
        %vm381 = vcmask 1043968
        %382 = vst.msk [vmem:[#allocation2] sm:$0xf] %vm381, %v376
        %383 = vst.msk [vmem:[#allocation2 + $0x8] sm:$0xf] %vm381, %v378
        %v384 = vld [vmem:[%s323] sm:$0xf]
        %v385 = vld [vmem:[%s323 + $0x4] sm:$0xf]
        %vm386 = vsmask.f32 3328
        %vm387 = vsmask.f32 7440
        %vm388 = vmor %vm386, %vm387
        %v390 = vshrl.u32 %v384, 16
        %v392 = vrot.slane %v390, 4
        %v393 = vshll.u32 %v384, 16
        %v395 = vrot.slane %v393, 5
        %v396 = vor.u32 %v392, %v395
        %v397 = vrot.slane %v396, 4
        %v399 = vshll.u32 %v385, 16
        %v401 = vrot.slane %v399, 5
        %v402 = vsel %vm388, %v397, %v401
        %v403 = vshrl.u32 %v385, 16
        %v405 = vrot.slane %v403, 4
        %v406 = vor.u32 %v405, %v401
        %v407 = vrot.slane %v406, 4
        %410 = vst.msk [vmem:[#allocation2 + $0x4] sm:$0xf] %vm369, %v402
        %vm411 = vmand %vm363, %vm386
        %v412 = vld [vmem:[#allocation2 + $0xc] sm:$0xf]
        %v413 = vsel %vm411, %v407, %v412
        %414 = vst [vmem:[#allocation2 + $0xc] sm:$0xf] %v413
        %vm415 = vcmask 519171
        %vm416 = vsmask.f32 7950
        %vm417 = vmand %vm415, %vm416
        %v418 = vld [vmem:[#allocation2 + $0xc] sm:$0x8]
        %v419 = vsel %vm417, 0, %v418
        %420 = vst [vmem:[#allocation2 + $0xc] sm:$0x8] %v419
        %v421 = vld [vmem:[#allocation2] sm:$0xff]
        %v422 = vld [vmem:[#allocation2 + $0x8] sm:$0xff]
        %v423 = vld [vmem:[%s1] sm:$0xff]
        %v424 = vld [vmem:[%s1 + $0x8] sm:$0xff]
        %v425 = vld [vmem:[%s1 + $0x10] sm:$0xff]
        %v426 = vld [vmem:[%s1 + $0x18] sm:$0xff]
        %v427 = vld [vmem:[%s1 + $0x20] sm:$0xff]
        %v428 = vld [vmem:[%s1 + $0x28] sm:$0xff]
        %v429 = vld [vmem:[%s1 + $0x30] sm:$0xff]
        %v430 = vld [vmem:[%s1 + $0x38] sm:$0xff]
        %v431 = vld [vmem:[%s1 + $0x40] sm:$0xff]
        %v432 = vld [vmem:[%s1 + $0x48] sm:$0xff]
        %v433 = vld [vmem:[%s1 + $0x50] sm:$0xff]
        %v434 = vld [vmem:[%s1 + $0x58] sm:$0xff]
        %v435 = vld [vmem:[%s1 + $0x60] sm:$0xff]
        %v436 = vld [vmem:[%s1 + $0x68] sm:$0xff]
        %v437 = vld [vmem:[%s1 + $0x70] sm:$0xff]
        %v438 = vld [vmem:[%s1 + $0x78] sm:$0xff]
        %v439 = vld [vmem:[%s1 + $0x80] sm:$0xff]
        %v440 = vld [vmem:[%s1 + $0x88] sm:$0xff]
        %v441 = vld [vmem:[%s1 + $0x90] sm:$0xff]
        %v442 = vld [vmem:[%s1 + $0x98] sm:$0xff]
        %v443 = vld [vmem:[%s1 + $0xa0] sm:$0xff]
        %v444 = vld [vmem:[%s1 + $0xa8] sm:$0xff]
        %v445 = vld [vmem:[%s1 + $0xb0] sm:$0xff]
        %v446 = vld [vmem:[%s1 + $0xb8] sm:$0xff]
        %v447 = vld [vmem:[%s1 + $0xc0] sm:$0xff]
        %v448 = vld [vmem:[%s1 + $0xc8] sm:$0xff]
        %v449 = vld [vmem:[%s1 + $0xd0] sm:$0xff]
        %v450 = vld [vmem:[%s1 + $0xd8] sm:$0xff]
        %v451 = vld [vmem:[%s1 + $0xe0] sm:$0xff]
        %v452 = vld [vmem:[%s1 + $0xe8] sm:$0xff]
        %v453 = vld [vmem:[%s1 + $0xf0] sm:$0xff]
        %v454 = vld [vmem:[%s1 + $0xf8] sm:$0xff]
        %v455 = vld [vmem:[%s1 + $0x100] sm:$0xff]
        %v456 = vld [vmem:[%s1 + $0x108] sm:$0xff]
        %v457 = vld [vmem:[%s1 + $0x110] sm:$0xff]
        %v458 = vld [vmem:[%s1 + $0x118] sm:$0xff]
        %v459 = vld [vmem:[%s1 + $0x120] sm:$0xff]
        %v460 = vld [vmem:[%s1 + $0x128] sm:$0xff]
        %v461 = vld [vmem:[%s1 + $0x130] sm:$0xff]
        %v462 = vld [vmem:[%s1 + $0x138] sm:$0xff]
        %v463 = vld [vmem:[%s1 + $0x140] sm:$0xff]
        %v464 = vld [vmem:[%s1 + $0x148] sm:$0xff]
        %v465 = vld [vmem:[%s1 + $0x150] sm:$0xff]
        %v466 = vld [vmem:[%s1 + $0x158] sm:$0xff]
        %v467 = vld [vmem:[%s1 + $0x160] sm:$0xff]
        %v468 = vld [vmem:[%s1 + $0x168] sm:$0xff]
        %v469 = vld [vmem:[%s1 + $0x170] sm:$0xff]
        %v470 = vld [vmem:[%s1 + $0x178] sm:$0xff]
        %v471 = vld [vmem:[%s2] sm:$0xf]
        %v473 = vlaneseq
        %v474 = vshrl.u32 %v473, 7
        %v475 = vsub.s32 0, %v474
        %v476 = vrot.slane %v471, %v475
        %v477 = vlaneseq
        %v478 = vshrl.u32 %v477, 7
        %v479 = vsub.s32 1, %v478
        %v480 = vrot.slane %v471, %v479
        %v481 = vlaneseq
        %v482 = vshrl.u32 %v481, 7
        %v483 = vsub.s32 2, %v482
        %v484 = vrot.slane %v471, %v483
        %v485 = vlaneseq
        %v486 = vshrl.u32 %v485, 7
        %v487 = vsub.s32 3, %v486
        %v488 = vrot.slane %v471, %v487
        %v495 = vunpack.c.l.b16 %v421
        %v496 = vunpack.c.h.b16 %v421
        %v497 = vunpack.c.l.b16 %v422
        %v498 = vunpack.c.h.b16 %v422
        %v499 = vpack.c.b16 %v497, %v495
        %v500 = vpack.c.b16 %v498, %v496
        %v550 = vunpack.c.l.b16 %v423
        %v551 = vunpack.c.h.b16 %v423
        %v552 = vunpack.c.l.b16 %v424
        %v553 = vunpack.c.h.b16 %v424
        %v554 = vunpack.c.l.b16 %v425
        %v555 = vunpack.c.h.b16 %v425
        %v556 = vunpack.c.l.b16 %v426
        %v557 = vunpack.c.h.b16 %v426
        %v558 = vunpack.c.l.b16 %v427
        %v559 = vunpack.c.h.b16 %v427
        %v560 = vunpack.c.l.b16 %v428
        %v561 = vunpack.c.h.b16 %v428
        %v562 = vunpack.c.l.b16 %v429
        %v563 = vunpack.c.h.b16 %v429
        %v564 = vunpack.c.l.b16 %v430
        %v565 = vunpack.c.h.b16 %v430
        %v566 = vunpack.c.l.b16 %v431
        %v567 = vunpack.c.h.b16 %v431
        %v568 = vunpack.c.l.b16 %v432
        %v569 = vunpack.c.h.b16 %v432
        %v570 = vunpack.c.l.b16 %v433
        %v571 = vunpack.c.h.b16 %v433
        %v572 = vunpack.c.l.b16 %v434
        %v573 = vunpack.c.h.b16 %v434
        %v574 = vunpack.c.l.b16 %v435
        %v575 = vunpack.c.h.b16 %v435
        %v576 = vunpack.c.l.b16 %v436
        %v577 = vunpack.c.h.b16 %v436
        %v578 = vunpack.c.l.b16 %v437
        %v579 = vunpack.c.h.b16 %v437
        %v580 = vunpack.c.l.b16 %v438
        %v581 = vunpack.c.h.b16 %v438
        %v582 = vunpack.c.l.b16 %v439
        %v583 = vunpack.c.h.b16 %v439
        %v584 = vunpack.c.l.b16 %v440
        %v585 = vunpack.c.h.b16 %v440
        %v586 = vunpack.c.l.b16 %v441
        %v587 = vunpack.c.h.b16 %v441
        %v588 = vunpack.c.l.b16 %v442
        %v589 = vunpack.c.h.b16 %v442
        %v590 = vunpack.c.l.b16 %v443
        %v591 = vunpack.c.h.b16 %v443
        %v592 = vunpack.c.l.b16 %v444
        %v593 = vunpack.c.h.b16 %v444
        %v594 = vunpack.c.l.b16 %v445
        %v595 = vunpack.c.h.b16 %v445
        %v596 = vunpack.c.l.b16 %v446
        %v597 = vunpack.c.h.b16 %v446
        %v598 = vunpack.c.l.b16 %v447
        %v599 = vunpack.c.h.b16 %v447
        %v600 = vunpack.c.l.b16 %v448
        %v601 = vunpack.c.h.b16 %v448
        %v602 = vunpack.c.l.b16 %v449
        %v603 = vunpack.c.h.b16 %v449
        %v604 = vunpack.c.l.b16 %v450
        %v605 = vunpack.c.h.b16 %v450
        %v606 = vunpack.c.l.b16 %v451
        %v607 = vunpack.c.h.b16 %v451
        %v608 = vunpack.c.l.b16 %v452
        %v609 = vunpack.c.h.b16 %v452
        %v610 = vunpack.c.l.b16 %v453
        %v611 = vunpack.c.h.b16 %v453
        %v612 = vunpack.c.l.b16 %v454
        %v613 = vunpack.c.h.b16 %v454
        %v614 = vunpack.c.l.b16 %v455
        %v615 = vunpack.c.h.b16 %v455
        %v616 = vunpack.c.l.b16 %v456
        %v617 = vunpack.c.h.b16 %v456
        %v618 = vunpack.c.l.b16 %v457
        %v619 = vunpack.c.h.b16 %v457
        %v620 = vunpack.c.l.b16 %v458
        %v621 = vunpack.c.h.b16 %v458
        %v622 = vunpack.c.l.b16 %v459
        %v623 = vunpack.c.h.b16 %v459
        %v624 = vunpack.c.l.b16 %v460
        %v625 = vunpack.c.h.b16 %v460
        %v626 = vunpack.c.l.b16 %v461
        %v627 = vunpack.c.h.b16 %v461
        %v628 = vunpack.c.l.b16 %v462
        %v629 = vunpack.c.h.b16 %v462
        %v630 = vunpack.c.l.b16 %v463
        %v631 = vunpack.c.h.b16 %v463
        %v632 = vunpack.c.l.b16 %v464
        %v633 = vunpack.c.h.b16 %v464
        %v634 = vunpack.c.l.b16 %v465
        %v635 = vunpack.c.h.b16 %v465
        %v636 = vunpack.c.l.b16 %v466
        %v637 = vunpack.c.h.b16 %v466
        %v638 = vunpack.c.l.b16 %v467
        %v639 = vunpack.c.h.b16 %v467
        %v640 = vunpack.c.l.b16 %v468
        %v641 = vunpack.c.h.b16 %v468
        %v642 = vunpack.c.l.b16 %v469
        %v643 = vunpack.c.h.b16 %v469
        %v644 = vunpack.c.l.b16 %v470
        %v645 = vunpack.c.h.b16 %v470
        %v646 = vpack.c.b16 %v554, %v550
        %v647 = vpack.c.b16 %v555, %v551
        %v648 = vpack.c.b16 %v556, %v552
        %v649 = vpack.c.b16 %v557, %v553
        %v650 = vpack.c.b16 %v562, %v558
        %v651 = vpack.c.b16 %v563, %v559
        %v652 = vpack.c.b16 %v564, %v560
        %v653 = vpack.c.b16 %v565, %v561
        %v654 = vpack.c.b16 %v570, %v566
        %v655 = vpack.c.b16 %v571, %v567
        %v656 = vpack.c.b16 %v572, %v568
        %v657 = vpack.c.b16 %v573, %v569
        %v658 = vpack.c.b16 %v578, %v574
        %v659 = vpack.c.b16 %v579, %v575
        %v660 = vpack.c.b16 %v580, %v576
        %v661 = vpack.c.b16 %v581, %v577
        %v662 = vpack.c.b16 %v586, %v582
        %v663 = vpack.c.b16 %v587, %v583
        %v664 = vpack.c.b16 %v588, %v584
        %v665 = vpack.c.b16 %v589, %v585
        %v666 = vpack.c.b16 %v594, %v590
        %v667 = vpack.c.b16 %v595, %v591
        %v668 = vpack.c.b16 %v596, %v592
        %v669 = vpack.c.b16 %v597, %v593
        %v670 = vpack.c.b16 %v602, %v598
        %v671 = vpack.c.b16 %v603, %v599
        %v672 = vpack.c.b16 %v604, %v600
        %v673 = vpack.c.b16 %v605, %v601
        %v674 = vpack.c.b16 %v610, %v606
        %v675 = vpack.c.b16 %v611, %v607
        %v676 = vpack.c.b16 %v612, %v608
        %v677 = vpack.c.b16 %v613, %v609
        %v678 = vpack.c.b16 %v618, %v614
        %v679 = vpack.c.b16 %v619, %v615
        %v680 = vpack.c.b16 %v620, %v616
        %v681 = vpack.c.b16 %v621, %v617
        %v682 = vpack.c.b16 %v626, %v622
        %v683 = vpack.c.b16 %v627, %v623
        %v684 = vpack.c.b16 %v628, %v624
        %v685 = vpack.c.b16 %v629, %v625
        %v686 = vpack.c.b16 %v634, %v630
        %v687 = vpack.c.b16 %v635, %v631
        %v688 = vpack.c.b16 %v636, %v632
        %v689 = vpack.c.b16 %v637, %v633
        %v690 = vpack.c.b16 %v642, %v638
        %v691 = vpack.c.b16 %v643, %v639
        %v692 = vpack.c.b16 %v644, %v640
        %v693 = vpack.c.b16 %v645, %v641
        %vm742 = vcmask 523264
        %v744 = vsel %vm742, %v500, 0
        %746 = vmatprep.subr.bf16.mxu0 %v675
        %747 = vmatpush1.bf16.msra.mxu0 %v674
        %748 = vmatprep.subr.bf16.mxu0 %v671
        %749 = vmatpush1.bf16.msra.mxu0 %v670
        %750 = vmatprep.subr.bf16.mxu0 %v667
        %751 = vmatpush1.bf16.msra.mxu0 %v666
        %752 = vmatprep.subr.bf16.mxu0 %v663
        %753 = vmatpush1.bf16.msra.mxu0 %v662
        %754 = vmatprep.subr.bf16.mxu0 %v659
        %755 = vmatpush1.bf16.msra.mxu0 %v658
        %756 = vmatprep.subr.bf16.mxu0 %v655
        %757 = vmatpush1.bf16.msra.mxu0 %v654
        %758 = vmatprep.subr.bf16.mxu0 %v651
        %759 = vmatpush1.bf16.msra.mxu0 %v650
        %760 = vmatprep.subr.bf16.mxu0 %v647
        %761 = vmatpush1.bf16.msra.mxu0 %v646
        %762 = vmatprep.subr.bf16.mxu0 0
        %763 = vmatpush2.bf16.msra.mxu0 0
        %764 = vmatprep.subr.bf16.mxu0 0
        %765 = vmatpush2.bf16.msra.mxu0 0
        %766 = vmatprep.subr.bf16.mxu0 0
        %767 = vmatpush2.bf16.msra.mxu0 0
        %768 = vmatprep.subr.bf16.mxu0 0
        %769 = vmatpush2.bf16.msra.mxu0 0
        %770 = vmatprep.subr.bf16.mxu0 %v691
        %771 = vmatpush2.bf16.msra.mxu0 %v690
        %772 = vmatprep.subr.bf16.mxu0 %v687
        %773 = vmatpush2.bf16.msra.mxu0 %v686
        %774 = vmatprep.subr.bf16.mxu0 %v683
        %775 = vmatpush2.bf16.msra.mxu0 %v682
        %776 = vmatprep.subr.bf16.mxu0 %v679
        %777 = vmatpush2.bf16.msra.mxu0 %v678
        %778 = vmatprep.mubr.bf16.mxu0 %v744
        %779 = vmatmul.mubr.bf16.gmra.mxu0 %v499
        %v780 = vpop.f32.mrf.mxu0
        %v781 = vadd.f32 %v476, %v780
        %v782 = vpop.f32.mrf.mxu0
        %v783 = vadd.f32 %v480, %v782
        %v784 = vpop.f32.mrf.mxu0
        %v785 = vadd.f32 %v476, %v784
        %v786 = vpop.f32.mrf.mxu0
        %v787 = vadd.f32 %v480, %v786
        %788 = vdwg.mxu0
        %789 = vmatprep.subr.bf16.mxu0 %v677
        %790 = vmatpush1.bf16.msra.mxu0 %v676
        %791 = vmatprep.subr.bf16.mxu0 %v673
        %792 = vmatpush1.bf16.msra.mxu0 %v672
        %793 = vmatprep.subr.bf16.mxu0 %v669
        %794 = vmatpush1.bf16.msra.mxu0 %v668
        %795 = vmatprep.subr.bf16.mxu0 %v665
        %796 = vmatpush1.bf16.msra.mxu0 %v664
        %797 = vmatprep.subr.bf16.mxu0 %v661
        %798 = vmatpush1.bf16.msra.mxu0 %v660
        %799 = vmatprep.subr.bf16.mxu0 %v657
        %800 = vmatpush1.bf16.msra.mxu0 %v656
        %801 = vmatprep.subr.bf16.mxu0 %v653
        %802 = vmatpush1.bf16.msra.mxu0 %v652
        %803 = vmatprep.subr.bf16.mxu0 %v649
        %804 = vmatpush1.bf16.msra.mxu0 %v648
        %805 = vmatprep.subr.bf16.mxu0 0
        %806 = vmatpush2.bf16.msra.mxu0 0
        %807 = vmatprep.subr.bf16.mxu0 0
        %808 = vmatpush2.bf16.msra.mxu0 0
        %809 = vmatprep.subr.bf16.mxu0 0
        %810 = vmatpush2.bf16.msra.mxu0 0
        %811 = vmatprep.subr.bf16.mxu0 0
        %812 = vmatpush2.bf16.msra.mxu0 0
        %813 = vmatprep.subr.bf16.mxu0 %v693
        %814 = vmatpush2.bf16.msra.mxu0 %v692
        %815 = vmatprep.subr.bf16.mxu0 %v689
        %816 = vmatpush2.bf16.msra.mxu0 %v688
        %817 = vmatprep.subr.bf16.mxu0 %v685
        %818 = vmatpush2.bf16.msra.mxu0 %v684
        %819 = vmatprep.subr.bf16.mxu0 %v681
        %820 = vmatpush2.bf16.msra.mxu0 %v680
        %821 = vmatprep.mubr.bf16.mxu0 %v744
        %822 = vmatmul.mubr.bf16.gmra.mxu0 %v499
        %v823 = vpop.f32.mrf.mxu0
        %v824 = vadd.f32 %v484, %v823
        %v825 = vpop.f32.mrf.mxu0
        %v826 = vadd.f32 %v488, %v825
        %v827 = vpop.f32.mrf.mxu0
        %v828 = vadd.f32 %v484, %v827
        %v829 = vpop.f32.mrf.mxu0
        %v830 = vadd.f32 %v488, %v829
        %831 = vdwg.mxu0
        %v832 = vmax.f32 %v781, 0.0
        %v833 = vmax.f32 %v783, 0.0
        %v834 = vmax.f32 %v824, 0.0
        %v835 = vmax.f32 %v826, 0.0
        %v836 = vmax.f32 %v785, 0.0
        %v837 = vmax.f32 %v787, 0.0
        %v838 = vmax.f32 %v828, 0.0
        %v839 = vmax.f32 %v830, 0.0
        %v840 = vpack.c.bf16 %v836, %v832
        %v841 = vpack.c.bf16 %v837, %v833
        %v842 = vpack.c.bf16 %v838, %v834
        %v843 = vpack.c.bf16 %v839, %v835
        %844 = vst [vmem:[%s328] sm:$0xff] %v832
        %845 = vst [vmem:[%s328 + $0x8] sm:$0xff] %v833
        %846 = vst [vmem:[%s328 + $0x10] sm:$0xff] %v834
        %847 = vst [vmem:[%s328 + $0x18] sm:$0xff] %v835
        %848 = vst [vmem:[%s328 + $0x20] sm:$0xff] %v836
        %849 = vst [vmem:[%s328 + $0x28] sm:$0xff] %v837
        %850 = vst [vmem:[%s328 + $0x30] sm:$0xff] %v838
        %851 = vst [vmem:[%s328 + $0x38] sm:$0xff] %v839
        %vm852 = vcmask 1040384
        %vm853 = vmand %vm852, %vm336
        %vm854 = vcmask 1044484
        %vm855 = vsmask.f32 4352
        %vm856 = vmand %vm854, %vm855
        %vm857 = vmor %vm856, %vm853
        %v858 = vld [vmem:[#allocation3] sm:$0x11]
        %v859 = vsel %vm857, 0, %v858
        %860 = vst [vmem:[#allocation3] sm:$0x11] %v859
        %v861 = vld [vmem:[#allocation3 + $0x8] sm:$0x11]
        %v862 = vsel %vm857, 0, %v861
        %863 = vst [vmem:[#allocation3 + $0x8] sm:$0x11] %v862
        %v868 = vunpack.c.l.b16 %v840
        %v869 = vunpack.c.l.b16 %v841
        %v870 = vunpack.c.l.b16 %v842
        %v871 = vunpack.c.l.b16 %v843
        %v872 = vunpack.c.h.b16 %v840
        %v873 = vunpack.c.h.b16 %v841
        %v874 = vunpack.c.h.b16 %v842
        %v875 = vunpack.c.h.b16 %v843
        %v876 = vpack.c.b16 %v869, %v868
        %v877 = vpack.c.b16 %v871, %v870
        %v878 = vpack.c.b16 %v873, %v872
        %v879 = vpack.c.b16 %v875, %v874
        %v881 = vshrl.u32 %v876, 16
        %v883 = vrot.slane %v881, 7
        %v884 = vshll.u32 %v876, 16
        %v886 = vor.u32 %v883, %v884
        %v888 = vshrl.u32 %v877, 16
        %v890 = vrot.slane %v888, 7
        %v891 = vshll.u32 %v877, 16
        %v893 = vor.u32 %v890, %v891
        %v894 = vrot.slane %v883, 4
        %v896 = vshrl.u32 %v878, 16
        %v898 = vrot.slane %v896, 7
        %v899 = vshll.u32 %v878, 16
        %v901 = vor.u32 %v898, %v899
        %v902 = vsel %vm344, %v894, %v901
        %v903 = vrot.slane %v890, 4
        %v905 = vshrl.u32 %v879, 16
        %v907 = vrot.slane %v905, 7
        %v908 = vshll.u32 %v879, 16
        %v910 = vor.u32 %v907, %v908
        %v911 = vsel %vm344, %v903, %v910
        %vm916 = vcmask 1043456
        %vm917 = vmand %vm916, %vm364
        %vm918 = vcmask 1047556
        %vm919 = vsmask.f32 7954
        %vm920 = vmand %vm918, %vm919
        %vm921 = vmor %vm920, %vm917
        %v922 = vld [vmem:[#allocation3] sm:$0xff]
        %v923 = vsel %vm921, %v886, %v922
        %924 = vst [vmem:[#allocation3] sm:$0xff] %v923
        %v925 = vld [vmem:[#allocation3 + $0x8] sm:$0xff]
        %v926 = vsel %vm921, %v893, %v925
        %927 = vst [vmem:[#allocation3 + $0x8] sm:$0xff] %v926
        %928 = vst [vmem:[#allocation3 + $0x30] sm:$0xff] %v902
        %929 = vst [vmem:[#allocation3 + $0x38] sm:$0xff] %v911
        %934 = vst [vmem:[#allocation3 + $0x10] sm:$0xff] %v876
        %935 = vst [vmem:[#allocation3 + $0x18] sm:$0xff] %v877
        %936 = vst [vmem:[#allocation3 + $0x40] sm:$0xff] %v878
        %937 = vst [vmem:[#allocation3 + $0x48] sm:$0xff] %v879
        %v938 = vrot.slane %v881, 4
        %v939 = vrot.slane %v884, 5
        %v940 = vor.u32 %v938, %v939
        %v941 = vrot.slane %v940, 4
        %v942 = vrot.slane %v899, 5
        %v943 = vsel %vm388, %v941, %v942
        %v944 = vrot.slane %v888, 4
        %v945 = vrot.slane %v891, 5
        %v946 = vor.u32 %v944, %v945
        %v947 = vrot.slane %v946, 4
        %v948 = vrot.slane %v908, 5
        %v949 = vsel %vm388, %v947, %v948
        %v950 = vrot.slane %v896, 4
        %v951 = vor.u32 %v950, %v942
        %v952 = vrot.slane %v951, 4
        %v953 = vrot.slane %v905, 4
        %v954 = vor.u32 %v953, %v948
        %v955 = vrot.slane %v954, 4
        %960 = vst [vmem:[#allocation3 + $0x20] sm:$0xff] %v943
        %961 = vst [vmem:[#allocation3 + $0x28] sm:$0xff] %v949
        %vm962 = vmand %vm916, %vm386
        %vm963 = vsmask.f32 7424
        %vm964 = vmand %vm918, %vm963
        %vm965 = vmor %vm964, %vm962
        %v966 = vld [vmem:[#allocation3 + $0x50] sm:$0xff]
        %v967 = vsel %vm965, %v952, %v966
        %968 = vst [vmem:[#allocation3 + $0x50] sm:$0xff] %v967
        %v969 = vld [vmem:[#allocation3 + $0x58] sm:$0xff]
        %v970 = vsel %vm965, %v955, %v969
        %971 = vst [vmem:[#allocation3 + $0x58] sm:$0xff] %v970
        %vm972 = vcmask 1043459
        %vm973 = vmand %vm972, %vm416
        %vm974 = vcmask 1047559
        %vm975 = vsmask.f32 7966
        %vm976 = vmand %vm974, %vm975
        %vm977 = vmor %vm976, %vm973
        %v978 = vld [vmem:[#allocation3 + $0x50] sm:$0x88]
        %v979 = vsel %vm977, 0, %v978
        %980 = vst [vmem:[#allocation3 + $0x50] sm:$0x88] %v979
        %v981 = vld [vmem:[#allocation3 + $0x58] sm:$0x88]
        %v982 = vsel %vm977, 0, %v981
        %983 = vst [vmem:[#allocation3 + $0x58] sm:$0x88] %v982
        %v984 = vld [vmem:[#allocation3] sm:$0xff]
        %v985 = vld [vmem:[#allocation3 + $0x8] sm:$0xff]
        %v986 = vld [vmem:[#allocation3 + $0x10] sm:$0xff]
        %v987 = vld [vmem:[#allocation3 + $0x18] sm:$0xff]
        %v988 = vld [vmem:[#allocation3 + $0x20] sm:$0xff]
        %v989 = vld [vmem:[#allocation3 + $0x28] sm:$0xff]
        %v990 = vld [vmem:[#allocation3 + $0x30] sm:$0xff]
        %v991 = vld [vmem:[#allocation3 + $0x38] sm:$0xff]
        %v992 = vld [vmem:[#allocation3 + $0x40] sm:$0xff]
        %v993 = vld [vmem:[#allocation3 + $0x48] sm:$0xff]
        %v994 = vld [vmem:[#allocation3 + $0x50] sm:$0xff]
        %v995 = vld [vmem:[#allocation3 + $0x58] sm:$0xff]
        %v996 = vld [vmem:[#allocation4] sm:$0xf]
        %v997 = vld [vmem:[#allocation4 + $0x4] sm:$0xf]
        %v998 = vld [vmem:[#allocation4 + $0x8] sm:$0xf]
        %v999 = vld [vmem:[#allocation4 + $0xc] sm:$0xf]
        %v1000 = vld [vmem:[#allocation4 + $0x10] sm:$0xf]
        %v1001 = vld [vmem:[#allocation4 + $0x14] sm:$0xf]
        %v1002 = vld [vmem:[#allocation4 + $0x18] sm:$0xf]
        %v1003 = vld [vmem:[#allocation4 + $0x1c] sm:$0xf]
        %v1004 = vld [vmem:[#allocation4 + $0x20] sm:$0xf]
        %v1005 = vld [vmem:[#allocation4 + $0x24] sm:$0xf]
        %v1006 = vld [vmem:[#allocation4 + $0x28] sm:$0xf]
        %v1007 = vld [vmem:[#allocation4 + $0x2c] sm:$0xf]
        %v1008 = vld [vmem:[#allocation4 + $0x30] sm:$0xf]
        %v1009 = vld [vmem:[#allocation4 + $0x34] sm:$0xf]
        %v1010 = vld [vmem:[#allocation4 + $0x38] sm:$0xf]
        %v1011 = vld [vmem:[#allocation4 + $0x3c] sm:$0xf]
        %v1012 = vld [vmem:[#allocation4 + $0x40] sm:$0xf]
        %v1013 = vld [vmem:[#allocation4 + $0x44] sm:$0xf]
        %v1014 = vld [vmem:[#allocation4 + $0x48] sm:$0xf]
        %v1015 = vld [vmem:[#allocation4 + $0x4c] sm:$0xf]
        %v1016 = vld [vmem:[#allocation4 + $0x50] sm:$0xf]
        %v1017 = vld [vmem:[#allocation4 + $0x54] sm:$0xf]
        %v1018 = vld [vmem:[#allocation4 + $0x58] sm:$0xf]
        %v1019 = vld [vmem:[#allocation4 + $0x5c] sm:$0xf]
        %v1020 = vld [vmem:[#allocation4 + $0x60] sm:$0xf]
        %v1021 = vld [vmem:[#allocation4 + $0x64] sm:$0xf]
        %v1022 = vld [vmem:[#allocation4 + $0x68] sm:$0xf]
        %v1023 = vld [vmem:[#allocation4 + $0x6c] sm:$0xf]
        %v1024 = vld [vmem:[#allocation4 + $0x70] sm:$0xf]
        %v1025 = vld [vmem:[#allocation4 + $0x74] sm:$0xf]
        %v1026 = vld [vmem:[#allocation4 + $0x78] sm:$0xf]
        %v1027 = vld [vmem:[#allocation4 + $0x7c] sm:$0xf]
        %v1028 = vld [vmem:[#allocation4 + $0x80] sm:$0xf]
        %v1029 = vld [vmem:[#allocation4 + $0x84] sm:$0xf]
        %v1030 = vld [vmem:[#allocation4 + $0x88] sm:$0xf]
        %v1031 = vld [vmem:[#allocation4 + $0x8c] sm:$0xf]
        %v1032 = vld [vmem:[#allocation4 + $0x90] sm:$0xf]
        %v1033 = vld [vmem:[#allocation4 + $0x94] sm:$0xf]
        %v1034 = vld [vmem:[#allocation4 + $0x98] sm:$0xf]
        %v1035 = vld [vmem:[#allocation4 + $0x9c] sm:$0xf]
        %v1036 = vld [vmem:[#allocation4 + $0xa0] sm:$0xf]
        %v1037 = vld [vmem:[#allocation4 + $0xa4] sm:$0xf]
        %v1038 = vld [vmem:[#allocation4 + $0xa8] sm:$0xf]
        %v1039 = vld [vmem:[#allocation4 + $0xac] sm:$0xf]
        %v1040 = vld [vmem:[#allocation4 + $0xb0] sm:$0xf]
        %v1041 = vld [vmem:[#allocation4 + $0xb4] sm:$0xf]
        %v1042 = vld [vmem:[#allocation4 + $0xb8] sm:$0xf]
        %v1043 = vld [vmem:[#allocation4 + $0xbc] sm:$0xf]
        %v1044 = vld [vmem:[#allocation4 + $0xc0] sm:$0xf]
        %v1045 = vld [vmem:[#allocation4 + $0xc4] sm:$0xf]
        %v1046 = vld [vmem:[#allocation4 + $0xc8] sm:$0xf]
        %v1047 = vld [vmem:[#allocation4 + $0xcc] sm:$0xf]
        %v1048 = vld [vmem:[#allocation4 + $0xd0] sm:$0xf]
        %v1049 = vld [vmem:[#allocation4 + $0xd4] sm:$0xf]
        %v1050 = vld [vmem:[#allocation4 + $0xd8] sm:$0xf]
        %v1051 = vld [vmem:[#allocation4 + $0xdc] sm:$0xf]
        %v1052 = vld [vmem:[#allocation4 + $0xe0] sm:$0xf]
        %v1053 = vld [vmem:[#allocation4 + $0xe4] sm:$0xf]
        %v1054 = vld [vmem:[#allocation4 + $0xe8] sm:$0xf]
        %v1055 = vld [vmem:[#allocation4 + $0xec] sm:$0xf]
        %v1056 = vld [vmem:[#allocation4 + $0xf0] sm:$0xf]
        %v1057 = vld [vmem:[#allocation4 + $0xf4] sm:$0xf]
        %v1058 = vld [vmem:[#allocation4 + $0xf8] sm:$0xf]
        %v1059 = vld [vmem:[#allocation4 + $0xfc] sm:$0xf]
        %v1060 = vld [vmem:[#allocation4 + $0x100] sm:$0xf]
        %v1061 = vld [vmem:[#allocation4 + $0x104] sm:$0xf]
        %v1062 = vld [vmem:[#allocation4 + $0x108] sm:$0xf]
        %v1063 = vld [vmem:[#allocation4 + $0x10c] sm:$0xf]
        %v1064 = vld [vmem:[#allocation4 + $0x110] sm:$0xf]
        %v1065 = vld [vmem:[#allocation4 + $0x114] sm:$0xf]
        %v1066 = vld [vmem:[#allocation4 + $0x118] sm:$0xf]
        %v1067 = vld [vmem:[#allocation4 + $0x11c] sm:$0xf]
        %v1068 = vld [vmem:[#allocation4 + $0x120] sm:$0xf]
        %v1069 = vld [vmem:[#allocation4 + $0x124] sm:$0xf]
        %v1070 = vld [vmem:[#allocation4 + $0x128] sm:$0xf]
        %v1071 = vld [vmem:[#allocation4 + $0x12c] sm:$0xf]
        %v1072 = vld [vmem:[#allocation4 + $0x130] sm:$0xf]
        %v1073 = vld [vmem:[#allocation4 + $0x134] sm:$0xf]
        %v1074 = vld [vmem:[#allocation4 + $0x138] sm:$0xf]
        %v1075 = vld [vmem:[#allocation4 + $0x13c] sm:$0xf]
        %v1076 = vld [vmem:[#allocation4 + $0x140] sm:$0xf]
        %v1077 = vld [vmem:[#allocation4 + $0x144] sm:$0xf]
        %v1078 = vld [vmem:[#allocation4 + $0x148] sm:$0xf]
        %v1079 = vld [vmem:[#allocation4 + $0x14c] sm:$0xf]
        %v1080 = vld [vmem:[#allocation4 + $0x150] sm:$0xf]
        %v1081 = vld [vmem:[#allocation4 + $0x154] sm:$0xf]
        %v1082 = vld [vmem:[#allocation4 + $0x158] sm:$0xf]
        %v1083 = vld [vmem:[#allocation4 + $0x15c] sm:$0xf]
        %v1084 = vld [vmem:[#allocation4 + $0x160] sm:$0xf]
        %v1085 = vld [vmem:[#allocation4 + $0x164] sm:$0xf]
        %v1086 = vld [vmem:[#allocation4 + $0x168] sm:$0xf]
        %v1087 = vld [vmem:[#allocation4 + $0x16c] sm:$0xf]
        %v1088 = vld [vmem:[#allocation4 + $0x170] sm:$0xf]
        %v1089 = vld [vmem:[#allocation4 + $0x174] sm:$0xf]
        %v1090 = vld [vmem:[#allocation4 + $0x178] sm:$0xf]
        %v1091 = vld [vmem:[#allocation4 + $0x17c] sm:$0xf]
        %v1092 = vld [vmem:[#allocation4 + $0x180] sm:$0xf]
        %v1093 = vld [vmem:[#allocation4 + $0x184] sm:$0xf]
        %v1094 = vld [vmem:[#allocation4 + $0x188] sm:$0xf]
        %v1095 = vld [vmem:[#allocation4 + $0x18c] sm:$0xf]
        %v1096 = vld [vmem:[#allocation4 + $0x190] sm:$0xf]
        %v1097 = vld [vmem:[#allocation4 + $0x194] sm:$0xf]
        %v1098 = vld [vmem:[#allocation4 + $0x198] sm:$0xf]
        %v1099 = vld [vmem:[#allocation4 + $0x19c] sm:$0xf]
        %v1100 = vld [vmem:[#allocation4 + $0x1a0] sm:$0xf]
        %v1101 = vld [vmem:[#allocation4 + $0x1a4] sm:$0xf]
        %v1102 = vld [vmem:[#allocation4 + $0x1a8] sm:$0xf]
        %v1103 = vld [vmem:[#allocation4 + $0x1ac] sm:$0xf]
        %v1104 = vld [vmem:[#allocation4 + $0x1b0] sm:$0xf]
        %v1105 = vld [vmem:[#allocation4 + $0x1b4] sm:$0xf]
        %v1106 = vld [vmem:[#allocation4 + $0x1b8] sm:$0xf]
        %v1107 = vld [vmem:[#allocation4 + $0x1bc] sm:$0xf]
        %v1108 = vld [vmem:[#allocation4 + $0x1c0] sm:$0xf]
        %v1109 = vld [vmem:[#allocation4 + $0x1c4] sm:$0xf]
        %v1110 = vld [vmem:[#allocation4 + $0x1c8] sm:$0xf]
        %v1111 = vld [vmem:[#allocation4 + $0x1cc] sm:$0xf]
        %v1112 = vld [vmem:[#allocation4 + $0x1d0] sm:$0xf]
        %v1113 = vld [vmem:[#allocation4 + $0x1d4] sm:$0xf]
        %v1114 = vld [vmem:[#allocation4 + $0x1d8] sm:$0xf]
        %v1115 = vld [vmem:[#allocation4 + $0x1dc] sm:$0xf]
        %v1116 = vld [vmem:[#allocation4 + $0x1e0] sm:$0xf]
        %v1117 = vld [vmem:[#allocation4 + $0x1e4] sm:$0xf]
        %v1118 = vld [vmem:[#allocation4 + $0x1e8] sm:$0xf]
        %v1119 = vld [vmem:[#allocation4 + $0x1ec] sm:$0xf]
        %v1120 = vld [vmem:[#allocation4 + $0x1f0] sm:$0xf]
        %v1121 = vld [vmem:[#allocation4 + $0x1f4] sm:$0xf]
        %v1122 = vld [vmem:[#allocation4 + $0x1f8] sm:$0xf]
        %v1123 = vld [vmem:[#allocation4 + $0x1fc] sm:$0xf]
        %v1124 = vld [vmem:[#allocation4 + $0x200] sm:$0xf]
        %v1125 = vld [vmem:[#allocation4 + $0x204] sm:$0xf]
        %v1126 = vld [vmem:[#allocation4 + $0x208] sm:$0xf]
        %v1127 = vld [vmem:[#allocation4 + $0x20c] sm:$0xf]
        %v1128 = vld [vmem:[#allocation4 + $0x210] sm:$0xf]
        %v1129 = vld [vmem:[#allocation4 + $0x214] sm:$0xf]
        %v1130 = vld [vmem:[#allocation4 + $0x218] sm:$0xf]
        %v1131 = vld [vmem:[#allocation4 + $0x21c] sm:$0xf]
        %v1132 = vld [vmem:[#allocation4 + $0x220] sm:$0xf]
        %v1133 = vld [vmem:[#allocation4 + $0x224] sm:$0xf]
        %v1134 = vld [vmem:[#allocation4 + $0x228] sm:$0xf]
        %v1135 = vld [vmem:[#allocation4 + $0x22c] sm:$0xf]
        %v1136 = vld [vmem:[#allocation4 + $0x230] sm:$0xf]
        %v1137 = vld [vmem:[#allocation4 + $0x234] sm:$0xf]
        %v1138 = vld [vmem:[#allocation4 + $0x238] sm:$0xf]
        %v1139 = vld [vmem:[#allocation4 + $0x23c] sm:$0xf]
        %v1140 = vld [vmem:[#allocation4 + $0x240] sm:$0xf]
        %v1141 = vld [vmem:[#allocation4 + $0x244] sm:$0xf]
        %v1142 = vld [vmem:[#allocation4 + $0x248] sm:$0xf]
        %v1143 = vld [vmem:[#allocation4 + $0x24c] sm:$0xf]
        %v1144 = vld [vmem:[#allocation4 + $0x250] sm:$0xf]
        %v1145 = vld [vmem:[#allocation4 + $0x254] sm:$0xf]
        %v1146 = vld [vmem:[#allocation4 + $0x258] sm:$0xf]
        %v1147 = vld [vmem:[#allocation4 + $0x25c] sm:$0xf]
        %v1148 = vld [vmem:[#allocation4 + $0x260] sm:$0xf]
        %v1149 = vld [vmem:[#allocation4 + $0x264] sm:$0xf]
        %v1150 = vld [vmem:[#allocation4 + $0x268] sm:$0xf]
        %v1151 = vld [vmem:[#allocation4 + $0x26c] sm:$0xf]
        %v1152 = vld [vmem:[#allocation4 + $0x270] sm:$0xf]
        %v1153 = vld [vmem:[#allocation4 + $0x274] sm:$0xf]
        %v1154 = vld [vmem:[#allocation4 + $0x278] sm:$0xf]
        %v1155 = vld [vmem:[#allocation4 + $0x27c] sm:$0xf]
        %v1156 = vld [vmem:[#allocation4 + $0x280] sm:$0xf]
        %v1157 = vld [vmem:[#allocation4 + $0x284] sm:$0xf]
        %v1158 = vld [vmem:[#allocation4 + $0x288] sm:$0xf]
        %v1159 = vld [vmem:[#allocation4 + $0x28c] sm:$0xf]
        %v1160 = vld [vmem:[#allocation4 + $0x290] sm:$0xf]
        %v1161 = vld [vmem:[#allocation4 + $0x294] sm:$0xf]
        %v1162 = vld [vmem:[#allocation4 + $0x298] sm:$0xf]
        %v1163 = vld [vmem:[#allocation4 + $0x29c] sm:$0xf]
        %v1164 = vld [vmem:[#allocation4 + $0x2a0] sm:$0xf]
        %v1165 = vld [vmem:[#allocation4 + $0x2a4] sm:$0xf]
        %v1166 = vld [vmem:[#allocation4 + $0x2a8] sm:$0xf]
        %v1167 = vld [vmem:[#allocation4 + $0x2ac] sm:$0xf]
        %v1168 = vld [vmem:[#allocation4 + $0x2b0] sm:$0xf]
        %v1169 = vld [vmem:[#allocation4 + $0x2b4] sm:$0xf]
        %v1170 = vld [vmem:[#allocation4 + $0x2b8] sm:$0xf]
        %v1171 = vld [vmem:[#allocation4 + $0x2bc] sm:$0xf]
        %v1172 = vld [vmem:[#allocation4 + $0x2c0] sm:$0xf]
        %v1173 = vld [vmem:[#allocation4 + $0x2c4] sm:$0xf]
        %v1174 = vld [vmem:[#allocation4 + $0x2c8] sm:$0xf]
        %v1175 = vld [vmem:[#allocation4 + $0x2cc] sm:$0xf]
        %v1176 = vld [vmem:[#allocation4 + $0x2d0] sm:$0xf]
        %v1177 = vld [vmem:[#allocation4 + $0x2d4] sm:$0xf]
        %v1178 = vld [vmem:[#allocation4 + $0x2d8] sm:$0xf]
        %v1179 = vld [vmem:[#allocation4 + $0x2dc] sm:$0xf]
        %v1180 = vld [vmem:[#allocation4 + $0x2e0] sm:$0xf]
        %v1181 = vld [vmem:[#allocation4 + $0x2e4] sm:$0xf]
        %v1182 = vld [vmem:[#allocation4 + $0x2e8] sm:$0xf]
        %v1183 = vld [vmem:[#allocation4 + $0x2ec] sm:$0xf]
        %v1184 = vld [vmem:[#allocation4 + $0x2f0] sm:$0xf]
        %v1185 = vld [vmem:[#allocation4 + $0x2f4] sm:$0xf]
        %v1186 = vld [vmem:[#allocation4 + $0x2f8] sm:$0xf]
        %v1187 = vld [vmem:[#allocation4 + $0x2fc] sm:$0xf]
        %v1188 = vld [vmem:[%s4] sm:$0x1]
        %v1190 = vlaneseq
        %v1191 = vshrl.u32 %v1190, 7
        %v1192 = vsub.s32 0, %v1191
        %v1193 = vrot.slane %v1188, %v1192
        %v1207 = vunpack.c.l.b16 %v984
        %v1208 = vunpack.c.h.b16 %v984
        %v1209 = vunpack.c.l.b16 %v985
        %v1210 = vunpack.c.h.b16 %v985
        %v1211 = vunpack.c.l.b16 %v986
        %v1212 = vunpack.c.h.b16 %v986
        %v1213 = vunpack.c.l.b16 %v987
        %v1214 = vunpack.c.h.b16 %v987
        %v1215 = vunpack.c.l.b16 %v988
        %v1216 = vunpack.c.h.b16 %v988
        %v1217 = vunpack.c.l.b16 %v989
        %v1218 = vunpack.c.h.b16 %v989
        %v1219 = vunpack.c.l.b16 %v990
        %v1220 = vunpack.c.h.b16 %v990
        %v1221 = vunpack.c.l.b16 %v991
        %v1222 = vunpack.c.h.b16 %v991
        %v1223 = vunpack.c.l.b16 %v992
        %v1224 = vunpack.c.h.b16 %v992
        %v1225 = vunpack.c.l.b16 %v993
        %v1226 = vunpack.c.h.b16 %v993
        %v1227 = vunpack.c.l.b16 %v994
        %v1228 = vunpack.c.h.b16 %v994
        %v1229 = vunpack.c.l.b16 %v995
        %v1230 = vunpack.c.h.b16 %v995
        %v1231 = vpack.c.b16 %v1219, %v1207
        %v1232 = vpack.c.b16 %v1220, %v1208
        %v1233 = vpack.c.b16 %v1221, %v1209
        %v1234 = vpack.c.b16 %v1222, %v1210
        %v1235 = vpack.c.b16 %v1223, %v1211
        %v1236 = vpack.c.b16 %v1224, %v1212
        %v1237 = vpack.c.b16 %v1225, %v1213
        %v1238 = vpack.c.b16 %v1226, %v1214
        %v1239 = vpack.c.b16 %v1227, %v1215
        %v1240 = vpack.c.b16 %v1228, %v1216
        %v1241 = vpack.c.b16 %v1229, %v1217
        %v1242 = vpack.c.b16 %v1230, %v1218
        %v1447 = vunpack.c.l.b16 %v996
        %v1448 = vunpack.c.l.b16 %v997
        %v1449 = vunpack.c.l.b16 %v998
        %v1450 = vunpack.c.l.b16 %v999
        %v1451 = vunpack.c.l.b16 %v1000
        %v1452 = vunpack.c.l.b16 %v1001
        %v1453 = vunpack.c.l.b16 %v1002
        %v1454 = vunpack.c.l.b16 %v1003
        %v1455 = vunpack.c.l.b16 %v1004
        %v1456 = vunpack.c.l.b16 %v1005
        %v1457 = vunpack.c.l.b16 %v1006
        %v1458 = vunpack.c.l.b16 %v1007
        %v1459 = vunpack.c.l.b16 %v1008
        %v1460 = vunpack.c.l.b16 %v1009
        %v1461 = vunpack.c.l.b16 %v1010
        %v1462 = vunpack.c.l.b16 %v1011
        %v1463 = vunpack.c.l.b16 %v1012
        %v1464 = vunpack.c.l.b16 %v1013
        %v1465 = vunpack.c.l.b16 %v1014
        %v1466 = vunpack.c.l.b16 %v1015
        %v1467 = vunpack.c.l.b16 %v1016
        %v1468 = vunpack.c.l.b16 %v1017
        %v1469 = vunpack.c.l.b16 %v1018
        %v1470 = vunpack.c.l.b16 %v1019
        %v1471 = vunpack.c.l.b16 %v1020
        %v1472 = vunpack.c.l.b16 %v1021
        %v1473 = vunpack.c.l.b16 %v1022
        %v1474 = vunpack.c.l.b16 %v1023
        %v1475 = vunpack.c.l.b16 %v1024
        %v1476 = vunpack.c.l.b16 %v1025
        %v1477 = vunpack.c.l.b16 %v1026
        %v1478 = vunpack.c.l.b16 %v1027
        %v1479 = vunpack.c.l.b16 %v1028
        %v1480 = vunpack.c.l.b16 %v1029
        %v1481 = vunpack.c.l.b16 %v1030
        %v1482 = vunpack.c.l.b16 %v1031
        %v1483 = vunpack.c.l.b16 %v1032
        %v1484 = vunpack.c.l.b16 %v1033
        %v1485 = vunpack.c.l.b16 %v1034
        %v1486 = vunpack.c.l.b16 %v1035
        %v1487 = vunpack.c.l.b16 %v1036
        %v1488 = vunpack.c.l.b16 %v1037
        %v1489 = vunpack.c.l.b16 %v1038
        %v1490 = vunpack.c.l.b16 %v1039
        %v1491 = vunpack.c.l.b16 %v1040
        %v1492 = vunpack.c.l.b16 %v1041
        %v1493 = vunpack.c.l.b16 %v1042
        %v1494 = vunpack.c.l.b16 %v1043
        %v1495 = vunpack.c.l.b16 %v1044
        %v1496 = vunpack.c.l.b16 %v1045
        %v1497 = vunpack.c.l.b16 %v1046
        %v1498 = vunpack.c.l.b16 %v1047
        %v1499 = vunpack.c.l.b16 %v1048
        %v1500 = vunpack.c.l.b16 %v1049
        %v1501 = vunpack.c.l.b16 %v1050
        %v1502 = vunpack.c.l.b16 %v1051
        %v1503 = vunpack.c.l.b16 %v1052
        %v1504 = vunpack.c.l.b16 %v1053
        %v1505 = vunpack.c.l.b16 %v1054
        %v1506 = vunpack.c.l.b16 %v1055
        %v1507 = vunpack.c.l.b16 %v1056
        %v1508 = vunpack.c.l.b16 %v1057
        %v1509 = vunpack.c.l.b16 %v1058
        %v1510 = vunpack.c.l.b16 %v1059
        %v1511 = vunpack.c.l.b16 %v1060
        %v1512 = vunpack.c.l.b16 %v1061
        %v1513 = vunpack.c.l.b16 %v1062
        %v1514 = vunpack.c.l.b16 %v1063
        %v1515 = vunpack.c.l.b16 %v1064
        %v1516 = vunpack.c.l.b16 %v1065
        %v1517 = vunpack.c.l.b16 %v1066
        %v1518 = vunpack.c.l.b16 %v1067
        %v1519 = vunpack.c.l.b16 %v1068
        %v1520 = vunpack.c.l.b16 %v1069
        %v1521 = vunpack.c.l.b16 %v1070
        %v1522 = vunpack.c.l.b16 %v1071
        %v1523 = vunpack.c.l.b16 %v1072
        %v1524 = vunpack.c.l.b16 %v1073
        %v1525 = vunpack.c.l.b16 %v1074
        %v1526 = vunpack.c.l.b16 %v1075
        %v1527 = vunpack.c.l.b16 %v1076
        %v1528 = vunpack.c.l.b16 %v1077
        %v1529 = vunpack.c.l.b16 %v1078
        %v1530 = vunpack.c.l.b16 %v1079
        %v1531 = vunpack.c.l.b16 %v1080
        %v1532 = vunpack.c.l.b16 %v1081
        %v1533 = vunpack.c.l.b16 %v1082
        %v1534 = vunpack.c.l.b16 %v1083
        %v1535 = vunpack.c.l.b16 %v1084
        %v1536 = vunpack.c.l.b16 %v1085
        %v1537 = vunpack.c.l.b16 %v1086
        %v1538 = vunpack.c.l.b16 %v1087
        %v1539 = vunpack.c.l.b16 %v1088
        %v1540 = vunpack.c.l.b16 %v1089
        %v1541 = vunpack.c.l.b16 %v1090
        %v1542 = vunpack.c.l.b16 %v1091
        %v1543 = vunpack.c.l.b16 %v1092
        %v1544 = vunpack.c.l.b16 %v1093
        %v1545 = vunpack.c.l.b16 %v1094
        %v1546 = vunpack.c.l.b16 %v1095
        %v1547 = vunpack.c.l.b16 %v1096
        %v1548 = vunpack.c.l.b16 %v1097
        %v1549 = vunpack.c.l.b16 %v1098
        %v1550 = vunpack.c.l.b16 %v1099
        %v1551 = vunpack.c.l.b16 %v1100
        %v1552 = vunpack.c.l.b16 %v1101
        %v1553 = vunpack.c.l.b16 %v1102
        %v1554 = vunpack.c.l.b16 %v1103
        %v1555 = vunpack.c.l.b16 %v1104
        %v1556 = vunpack.c.l.b16 %v1105
        %v1557 = vunpack.c.l.b16 %v1106
        %v1558 = vunpack.c.l.b16 %v1107
        %v1559 = vunpack.c.l.b16 %v1108
        %v1560 = vunpack.c.l.b16 %v1109
        %v1561 = vunpack.c.l.b16 %v1110
        %v1562 = vunpack.c.l.b16 %v1111
        %v1563 = vunpack.c.l.b16 %v1112
        %v1564 = vunpack.c.l.b16 %v1113
        %v1565 = vunpack.c.l.b16 %v1114
        %v1566 = vunpack.c.l.b16 %v1115
        %v1567 = vunpack.c.l.b16 %v1116
        %v1568 = vunpack.c.l.b16 %v1117
        %v1569 = vunpack.c.l.b16 %v1118
        %v1570 = vunpack.c.l.b16 %v1119
        %v1571 = vunpack.c.l.b16 %v1120
        %v1572 = vunpack.c.l.b16 %v1121
        %v1573 = vunpack.c.l.b16 %v1122
        %v1574 = vunpack.c.l.b16 %v1123
        %v1575 = vunpack.c.l.b16 %v1124
        %v1576 = vunpack.c.l.b16 %v1125
        %v1577 = vunpack.c.l.b16 %v1126
        %v1578 = vunpack.c.l.b16 %v1127
        %v1579 = vunpack.c.l.b16 %v1128
        %v1580 = vunpack.c.l.b16 %v1129
        %v1581 = vunpack.c.l.b16 %v1130
        %v1582 = vunpack.c.l.b16 %v1131
        %v1583 = vunpack.c.l.b16 %v1132
        %v1584 = vunpack.c.l.b16 %v1133
        %v1585 = vunpack.c.l.b16 %v1134
        %v1586 = vunpack.c.l.b16 %v1135
        %v1587 = vunpack.c.l.b16 %v1136
        %v1588 = vunpack.c.l.b16 %v1137
        %v1589 = vunpack.c.l.b16 %v1138
        %v1590 = vunpack.c.l.b16 %v1139
        %v1591 = vunpack.c.l.b16 %v1140
        %v1592 = vunpack.c.l.b16 %v1141
        %v1593 = vunpack.c.l.b16 %v1142
        %v1594 = vunpack.c.l.b16 %v1143
        %v1595 = vunpack.c.l.b16 %v1144
        %v1596 = vunpack.c.l.b16 %v1145
        %v1597 = vunpack.c.l.b16 %v1146
        %v1598 = vunpack.c.l.b16 %v1147
        %v1599 = vunpack.c.l.b16 %v1148
        %v1600 = vunpack.c.l.b16 %v1149
        %v1601 = vunpack.c.l.b16 %v1150
        %v1602 = vunpack.c.l.b16 %v1151
        %v1603 = vunpack.c.l.b16 %v1152
        %v1604 = vunpack.c.l.b16 %v1153
        %v1605 = vunpack.c.l.b16 %v1154
        %v1606 = vunpack.c.l.b16 %v1155
        %v1607 = vunpack.c.l.b16 %v1156
        %v1608 = vunpack.c.l.b16 %v1157
        %v1609 = vunpack.c.l.b16 %v1158
        %v1610 = vunpack.c.l.b16 %v1159
        %v1611 = vunpack.c.l.b16 %v1160
        %v1612 = vunpack.c.l.b16 %v1161
        %v1613 = vunpack.c.l.b16 %v1162
        %v1614 = vunpack.c.l.b16 %v1163
        %v1615 = vunpack.c.l.b16 %v1164
        %v1616 = vunpack.c.l.b16 %v1165
        %v1617 = vunpack.c.l.b16 %v1166
        %v1618 = vunpack.c.l.b16 %v1167
        %v1619 = vunpack.c.l.b16 %v1168
        %v1620 = vunpack.c.l.b16 %v1169
        %v1621 = vunpack.c.l.b16 %v1170
        %v1622 = vunpack.c.l.b16 %v1171
        %v1623 = vunpack.c.l.b16 %v1172
        %v1624 = vunpack.c.l.b16 %v1173
        %v1625 = vunpack.c.l.b16 %v1174
        %v1626 = vunpack.c.l.b16 %v1175
        %v1627 = vunpack.c.l.b16 %v1176
        %v1628 = vunpack.c.l.b16 %v1177
        %v1629 = vunpack.c.l.b16 %v1178
        %v1630 = vunpack.c.l.b16 %v1179
        %v1631 = vunpack.c.l.b16 %v1180
        %v1632 = vunpack.c.l.b16 %v1181
        %v1633 = vunpack.c.l.b16 %v1182
        %v1634 = vunpack.c.l.b16 %v1183
        %v1635 = vunpack.c.l.b16 %v1184
        %v1636 = vunpack.c.l.b16 %v1185
        %v1637 = vunpack.c.l.b16 %v1186
        %v1638 = vunpack.c.l.b16 %v1187
        %v1639 = vpack.c.b16 %v1448, %v1447
        %v1640 = vpack.c.b16 %v1450, %v1449
        %v1641 = vpack.c.b16 %v1452, %v1451
        %v1642 = vpack.c.b16 %v1454, %v1453
        %v1643 = vpack.c.b16 %v1456, %v1455
        %v1644 = vpack.c.b16 %v1458, %v1457
        %v1645 = vpack.c.b16 %v1460, %v1459
        %v1646 = vpack.c.b16 %v1462, %v1461
        %v1647 = vpack.c.b16 %v1464, %v1463
        %v1648 = vpack.c.b16 %v1466, %v1465
        %v1649 = vpack.c.b16 %v1468, %v1467
        %v1650 = vpack.c.b16 %v1470, %v1469
        %v1651 = vpack.c.b16 %v1472, %v1471
        %v1652 = vpack.c.b16 %v1474, %v1473
        %v1653 = vpack.c.b16 %v1476, %v1475
        %v1654 = vpack.c.b16 %v1478, %v1477
        %v1655 = vpack.c.b16 %v1480, %v1479
        %v1656 = vpack.c.b16 %v1482, %v1481
        %v1657 = vpack.c.b16 %v1484, %v1483
        %v1658 = vpack.c.b16 %v1486, %v1485
        %v1659 = vpack.c.b16 %v1488, %v1487
        %v1660 = vpack.c.b16 %v1490, %v1489
        %v1661 = vpack.c.b16 %v1492, %v1491
        %v1662 = vpack.c.b16 %v1494, %v1493
        %v1663 = vpack.c.b16 %v1496, %v1495
        %v1664 = vpack.c.b16 %v1498, %v1497
        %v1665 = vpack.c.b16 %v1500, %v1499
        %v1666 = vpack.c.b16 %v1502, %v1501
        %v1667 = vpack.c.b16 %v1504, %v1503
        %v1668 = vpack.c.b16 %v1506, %v1505
        %v1669 = vpack.c.b16 %v1508, %v1507
        %v1670 = vpack.c.b16 %v1510, %v1509
        %v1671 = vpack.c.b16 %v1512, %v1511
        %v1672 = vpack.c.b16 %v1514, %v1513
        %v1673 = vpack.c.b16 %v1516, %v1515
        %v1674 = vpack.c.b16 %v1518, %v1517
        %v1675 = vpack.c.b16 %v1520, %v1519
        %v1676 = vpack.c.b16 %v1522, %v1521
        %v1677 = vpack.c.b16 %v1524, %v1523
        %v1678 = vpack.c.b16 %v1526, %v1525
        %v1679 = vpack.c.b16 %v1528, %v1527
        %v1680 = vpack.c.b16 %v1530, %v1529
        %v1681 = vpack.c.b16 %v1532, %v1531
        %v1682 = vpack.c.b16 %v1534, %v1533
        %v1683 = vpack.c.b16 %v1536, %v1535
        %v1684 = vpack.c.b16 %v1538, %v1537
        %v1685 = vpack.c.b16 %v1540, %v1539
        %v1686 = vpack.c.b16 %v1542, %v1541
        %v1687 = vpack.c.b16 %v1544, %v1543
        %v1688 = vpack.c.b16 %v1546, %v1545
        %v1689 = vpack.c.b16 %v1548, %v1547
        %v1690 = vpack.c.b16 %v1550, %v1549
        %v1691 = vpack.c.b16 %v1552, %v1551
        %v1692 = vpack.c.b16 %v1554, %v1553
        %v1693 = vpack.c.b16 %v1556, %v1555
        %v1694 = vpack.c.b16 %v1558, %v1557
        %v1695 = vpack.c.b16 %v1560, %v1559
        %v1696 = vpack.c.b16 %v1562, %v1561
        %v1697 = vpack.c.b16 %v1564, %v1563
        %v1698 = vpack.c.b16 %v1566, %v1565
        %v1699 = vpack.c.b16 %v1568, %v1567
        %v1700 = vpack.c.b16 %v1570, %v1569
        %v1701 = vpack.c.b16 %v1572, %v1571
        %v1702 = vpack.c.b16 %v1574, %v1573
        %v1703 = vpack.c.b16 %v1576, %v1575
        %v1704 = vpack.c.b16 %v1578, %v1577
        %v1705 = vpack.c.b16 %v1580, %v1579
        %v1706 = vpack.c.b16 %v1582, %v1581
        %v1707 = vpack.c.b16 %v1584, %v1583
        %v1708 = vpack.c.b16 %v1586, %v1585
        %v1709 = vpack.c.b16 %v1588, %v1587
        %v1710 = vpack.c.b16 %v1590, %v1589
        %v1711 = vpack.c.b16 %v1592, %v1591
        %v1712 = vpack.c.b16 %v1594, %v1593
        %v1713 = vpack.c.b16 %v1596, %v1595
        %v1714 = vpack.c.b16 %v1598, %v1597
        %v1715 = vpack.c.b16 %v1600, %v1599
        %v1716 = vpack.c.b16 %v1602, %v1601
        %v1717 = vpack.c.b16 %v1604, %v1603
        %v1718 = vpack.c.b16 %v1606, %v1605
        %v1719 = vpack.c.b16 %v1608, %v1607
        %v1720 = vpack.c.b16 %v1610, %v1609
        %v1721 = vpack.c.b16 %v1612, %v1611
        %v1722 = vpack.c.b16 %v1614, %v1613
        %v1723 = vpack.c.b16 %v1616, %v1615
        %v1724 = vpack.c.b16 %v1618, %v1617
        %v1725 = vpack.c.b16 %v1620, %v1619
        %v1726 = vpack.c.b16 %v1622, %v1621
        %v1727 = vpack.c.b16 %v1624, %v1623
        %v1728 = vpack.c.b16 %v1626, %v1625
        %v1729 = vpack.c.b16 %v1628, %v1627
        %v1730 = vpack.c.b16 %v1630, %v1629
        %v1731 = vpack.c.b16 %v1632, %v1631
        %v1732 = vpack.c.b16 %v1634, %v1633
        %v1733 = vpack.c.b16 %v1636, %v1635
        %v1734 = vpack.c.b16 %v1638, %v1637
        %1831 = vmatprep.subr.bf16.mxu0 0
        %1832 = vmatpush1.bf16.msra.mxu0 %v1646
        %1833 = vmatprep.subr.bf16.mxu0 0
        %1834 = vmatpush1.bf16.msra.mxu0 %v1645
        %1835 = vmatprep.subr.bf16.mxu0 0
        %1836 = vmatpush1.bf16.msra.mxu0 %v1644
        %1837 = vmatprep.subr.bf16.mxu0 0
        %1838 = vmatpush1.bf16.msra.mxu0 %v1643
        %1839 = vmatprep.subr.bf16.mxu0 0
        %1840 = vmatpush1.bf16.msra.mxu0 %v1642
        %1841 = vmatprep.subr.bf16.mxu0 0
        %1842 = vmatpush1.bf16.msra.mxu0 %v1641
        %1843 = vmatprep.subr.bf16.mxu0 0
        %1844 = vmatpush1.bf16.msra.mxu0 %v1640
        %1845 = vmatprep.subr.bf16.mxu0 0
        %1846 = vmatpush1.bf16.msra.mxu0 %v1639
        %1847 = vmatprep.subr.bf16.mxu0 0
        %1848 = vmatpush2.bf16.msra.mxu0 %v1654
        %1849 = vmatprep.subr.bf16.mxu0 0
        %1850 = vmatpush2.bf16.msra.mxu0 %v1653
        %1851 = vmatprep.subr.bf16.mxu0 0
        %1852 = vmatpush2.bf16.msra.mxu0 %v1652
        %1853 = vmatprep.subr.bf16.mxu0 0
        %1854 = vmatpush2.bf16.msra.mxu0 %v1651
        %1855 = vmatprep.subr.bf16.mxu0 0
        %1856 = vmatpush2.bf16.msra.mxu0 %v1650
        %1857 = vmatprep.subr.bf16.mxu0 0
        %1858 = vmatpush2.bf16.msra.mxu0 %v1649
        %1859 = vmatprep.subr.bf16.mxu0 0
        %1860 = vmatpush2.bf16.msra.mxu0 %v1648
        %1861 = vmatprep.subr.bf16.mxu0 0
        %1862 = vmatpush2.bf16.msra.mxu0 %v1647
        %1863 = vmatprep.mubr.bf16.mxu0 %v1232
        %1864 = vmatmul.mubr.bf16.gmra.mxu0 %v1231
        %v1865 = vpop.f32.mrf.mxu0
        %v1866 = vadd.f32 %v1193, %v1865
        %v1867 = vpop.f32.mrf.mxu0
        %v1868 = vpop.f32.mrf.mxu0
        %v1869 = vadd.f32 %v1193, %v1868
        %v1870 = vpop.f32.mrf.mxu0
        %1871 = vdwg.mxu0
        %1872 = vmatprep.subr.bf16.mxu0 0
        %1873 = vmatpush1.bf16.msra.mxu0 %v1662
        %1874 = vmatprep.subr.bf16.mxu0 0
        %1875 = vmatpush1.bf16.msra.mxu0 %v1661
        %1876 = vmatprep.subr.bf16.mxu0 0
        %1877 = vmatpush1.bf16.msra.mxu0 %v1660
        %1878 = vmatprep.subr.bf16.mxu0 0
        %1879 = vmatpush1.bf16.msra.mxu0 %v1659
        %1880 = vmatprep.subr.bf16.mxu0 0
        %1881 = vmatpush1.bf16.msra.mxu0 %v1658
        %1882 = vmatprep.subr.bf16.mxu0 0
        %1883 = vmatpush1.bf16.msra.mxu0 %v1657
        %1884 = vmatprep.subr.bf16.mxu0 0
        %1885 = vmatpush1.bf16.msra.mxu0 %v1656
        %1886 = vmatprep.subr.bf16.mxu0 0
        %1887 = vmatpush1.bf16.msra.mxu0 %v1655
        %1888 = vmatprep.subr.bf16.mxu0 0
        %1889 = vmatpush2.bf16.msra.mxu0 %v1670
        %1890 = vmatprep.subr.bf16.mxu0 0
        %1891 = vmatpush2.bf16.msra.mxu0 %v1669
        %1892 = vmatprep.subr.bf16.mxu0 0
        %1893 = vmatpush2.bf16.msra.mxu0 %v1668
        %1894 = vmatprep.subr.bf16.mxu0 0
        %1895 = vmatpush2.bf16.msra.mxu0 %v1667
        %1896 = vmatprep.subr.bf16.mxu0 0
        %1897 = vmatpush2.bf16.msra.mxu0 %v1666
        %1898 = vmatprep.subr.bf16.mxu0 0
        %1899 = vmatpush2.bf16.msra.mxu0 %v1665
        %1900 = vmatprep.subr.bf16.mxu0 0
        %1901 = vmatpush2.bf16.msra.mxu0 %v1664
        %1902 = vmatprep.subr.bf16.mxu0 0
        %1903 = vmatpush2.bf16.msra.mxu0 %v1663
        %1904 = vmatprep.mubr.bf16.mxu0 %v1234
        %1905 = vmatmul.mubr.bf16.gmra.mxu0 %v1233
        %v1906 = vpop.f32.mrf.mxu0
        %v1907 = vadd.f32 %v1866, %v1906
        %v1908 = vpop.f32.mrf.mxu0
        %v1909 = vpop.f32.mrf.mxu0
        %v1910 = vadd.f32 %v1869, %v1909
        %v1911 = vpop.f32.mrf.mxu0
        %1912 = vdwg.mxu0
        %1913 = vmatprep.subr.bf16.mxu0 0
        %1914 = vmatpush1.bf16.msra.mxu0 %v1678
        %1915 = vmatprep.subr.bf16.mxu0 0
        %1916 = vmatpush1.bf16.msra.mxu0 %v1677
        %1917 = vmatprep.subr.bf16.mxu0 0
        %1918 = vmatpush1.bf16.msra.mxu0 %v1676
        %1919 = vmatprep.subr.bf16.mxu0 0
        %1920 = vmatpush1.bf16.msra.mxu0 %v1675
        %1921 = vmatprep.subr.bf16.mxu0 0
        %1922 = vmatpush1.bf16.msra.mxu0 %v1674
        %1923 = vmatprep.subr.bf16.mxu0 0
        %1924 = vmatpush1.bf16.msra.mxu0 %v1673
        %1925 = vmatprep.subr.bf16.mxu0 0
        %1926 = vmatpush1.bf16.msra.mxu0 %v1672
        %1927 = vmatprep.subr.bf16.mxu0 0
        %1928 = vmatpush1.bf16.msra.mxu0 %v1671
        %1929 = vmatprep.subr.bf16.mxu0 0
        %1930 = vmatpush2.bf16.msra.mxu0 %v1686
        %1931 = vmatprep.subr.bf16.mxu0 0
        %1932 = vmatpush2.bf16.msra.mxu0 %v1685
        %1933 = vmatprep.subr.bf16.mxu0 0
        %1934 = vmatpush2.bf16.msra.mxu0 %v1684
        %1935 = vmatprep.subr.bf16.mxu0 0
        %1936 = vmatpush2.bf16.msra.mxu0 %v1683
        %1937 = vmatprep.subr.bf16.mxu0 0
        %1938 = vmatpush2.bf16.msra.mxu0 %v1682
        %1939 = vmatprep.subr.bf16.mxu0 0
        %1940 = vmatpush2.bf16.msra.mxu0 %v1681
        %1941 = vmatprep.subr.bf16.mxu0 0
        %1942 = vmatpush2.bf16.msra.mxu0 %v1680
        %1943 = vmatprep.subr.bf16.mxu0 0
        %1944 = vmatpush2.bf16.msra.mxu0 %v1679
        %1945 = vmatprep.mubr.bf16.mxu0 %v1236
        %1946 = vmatmul.mubr.bf16.gmra.mxu0 %v1235
        %v1947 = vpop.f32.mrf.mxu0
        %v1948 = vadd.f32 %v1907, %v1947
        %v1949 = vpop.f32.mrf.mxu0
        %v1950 = vpop.f32.mrf.mxu0
        %v1951 = vadd.f32 %v1910, %v1950
        %v1952 = vpop.f32.mrf.mxu0
        %1953 = vdwg.mxu0
        %1954 = vmatprep.subr.bf16.mxu0 0
        %1955 = vmatpush1.bf16.msra.mxu0 %v1694
        %1956 = vmatprep.subr.bf16.mxu0 0
        %1957 = vmatpush1.bf16.msra.mxu0 %v1693
        %1958 = vmatprep.subr.bf16.mxu0 0
        %1959 = vmatpush1.bf16.msra.mxu0 %v1692
        %1960 = vmatprep.subr.bf16.mxu0 0
        %1961 = vmatpush1.bf16.msra.mxu0 %v1691
        %1962 = vmatprep.subr.bf16.mxu0 0
        %1963 = vmatpush1.bf16.msra.mxu0 %v1690
        %1964 = vmatprep.subr.bf16.mxu0 0
        %1965 = vmatpush1.bf16.msra.mxu0 %v1689
        %1966 = vmatprep.subr.bf16.mxu0 0
        %1967 = vmatpush1.bf16.msra.mxu0 %v1688
        %1968 = vmatprep.subr.bf16.mxu0 0
        %1969 = vmatpush1.bf16.msra.mxu0 %v1687
        %1970 = vmatprep.subr.bf16.mxu0 0
        %1971 = vmatpush2.bf16.msra.mxu0 %v1702
        %1972 = vmatprep.subr.bf16.mxu0 0
        %1973 = vmatpush2.bf16.msra.mxu0 %v1701
        %1974 = vmatprep.subr.bf16.mxu0 0
        %1975 = vmatpush2.bf16.msra.mxu0 %v1700
        %1976 = vmatprep.subr.bf16.mxu0 0
        %1977 = vmatpush2.bf16.msra.mxu0 %v1699
        %1978 = vmatprep.subr.bf16.mxu0 0
        %1979 = vmatpush2.bf16.msra.mxu0 %v1698
        %1980 = vmatprep.subr.bf16.mxu0 0
        %1981 = vmatpush2.bf16.msra.mxu0 %v1697
        %1982 = vmatprep.subr.bf16.mxu0 0
        %1983 = vmatpush2.bf16.msra.mxu0 %v1696
        %1984 = vmatprep.subr.bf16.mxu0 0
        %1985 = vmatpush2.bf16.msra.mxu0 %v1695
        %1986 = vmatprep.mubr.bf16.mxu0 %v1238
        %1987 = vmatmul.mubr.bf16.gmra.mxu0 %v1237
        %v1988 = vpop.f32.mrf.mxu0
        %v1989 = vadd.f32 %v1948, %v1988
        %v1990 = vpop.f32.mrf.mxu0
        %v1991 = vpop.f32.mrf.mxu0
        %v1992 = vadd.f32 %v1951, %v1991
        %v1993 = vpop.f32.mrf.mxu0
        %1994 = vdwg.mxu0
        %1995 = vmatprep.subr.bf16.mxu0 0
        %1996 = vmatpush1.bf16.msra.mxu0 %v1710
        %1997 = vmatprep.subr.bf16.mxu0 0
        %1998 = vmatpush1.bf16.msra.mxu0 %v1709
        %1999 = vmatprep.subr.bf16.mxu0 0
        %2000 = vmatpush1.bf16.msra.mxu0 %v1708
        %2001 = vmatprep.subr.bf16.mxu0 0
        %2002 = vmatpush1.bf16.msra.mxu0 %v1707
        %2003 = vmatprep.subr.bf16.mxu0 0
        %2004 = vmatpush1.bf16.msra.mxu0 %v1706
        %2005 = vmatprep.subr.bf16.mxu0 0
        %2006 = vmatpush1.bf16.msra.mxu0 %v1705
        %2007 = vmatprep.subr.bf16.mxu0 0
        %2008 = vmatpush1.bf16.msra.mxu0 %v1704
        %2009 = vmatprep.subr.bf16.mxu0 0
        %2010 = vmatpush1.bf16.msra.mxu0 %v1703
        %2011 = vmatprep.subr.bf16.mxu0 0
        %2012 = vmatpush2.bf16.msra.mxu0 %v1718
        %2013 = vmatprep.subr.bf16.mxu0 0
        %2014 = vmatpush2.bf16.msra.mxu0 %v1717
        %2015 = vmatprep.subr.bf16.mxu0 0
        %2016 = vmatpush2.bf16.msra.mxu0 %v1716
        %2017 = vmatprep.subr.bf16.mxu0 0
        %2018 = vmatpush2.bf16.msra.mxu0 %v1715
        %2019 = vmatprep.subr.bf16.mxu0 0
        %2020 = vmatpush2.bf16.msra.mxu0 %v1714
        %2021 = vmatprep.subr.bf16.mxu0 0
        %2022 = vmatpush2.bf16.msra.mxu0 %v1713
        %2023 = vmatprep.subr.bf16.mxu0 0
        %2024 = vmatpush2.bf16.msra.mxu0 %v1712
        %2025 = vmatprep.subr.bf16.mxu0 0
        %2026 = vmatpush2.bf16.msra.mxu0 %v1711
        %2027 = vmatprep.mubr.bf16.mxu0 %v1240
        %2028 = vmatmul.mubr.bf16.gmra.mxu0 %v1239
        %v2029 = vpop.f32.mrf.mxu0
        %v2030 = vadd.f32 %v1989, %v2029
        %v2031 = vpop.f32.mrf.mxu0
        %v2032 = vpop.f32.mrf.mxu0
        %v2033 = vadd.f32 %v1992, %v2032
        %v2034 = vpop.f32.mrf.mxu0
        %2035 = vdwg.mxu0
        %2036 = vmatprep.subr.bf16.mxu0 0
        %2037 = vmatpush1.bf16.msra.mxu0 %v1726
        %2038 = vmatprep.subr.bf16.mxu0 0
        %2039 = vmatpush1.bf16.msra.mxu0 %v1725
        %2040 = vmatprep.subr.bf16.mxu0 0
        %2041 = vmatpush1.bf16.msra.mxu0 %v1724
        %2042 = vmatprep.subr.bf16.mxu0 0
        %2043 = vmatpush1.bf16.msra.mxu0 %v1723
        %2044 = vmatprep.subr.bf16.mxu0 0
        %2045 = vmatpush1.bf16.msra.mxu0 %v1722
        %2046 = vmatprep.subr.bf16.mxu0 0
        %2047 = vmatpush1.bf16.msra.mxu0 %v1721
        %2048 = vmatprep.subr.bf16.mxu0 0
        %2049 = vmatpush1.bf16.msra.mxu0 %v1720
        %2050 = vmatprep.subr.bf16.mxu0 0
        %2051 = vmatpush1.bf16.msra.mxu0 %v1719
        %2052 = vmatprep.subr.bf16.mxu0 0
        %2053 = vmatpush2.bf16.msra.mxu0 %v1734
        %2054 = vmatprep.subr.bf16.mxu0 0
        %2055 = vmatpush2.bf16.msra.mxu0 %v1733
        %2056 = vmatprep.subr.bf16.mxu0 0
        %2057 = vmatpush2.bf16.msra.mxu0 %v1732
        %2058 = vmatprep.subr.bf16.mxu0 0
        %2059 = vmatpush2.bf16.msra.mxu0 %v1731
        %2060 = vmatprep.subr.bf16.mxu0 0
        %2061 = vmatpush2.bf16.msra.mxu0 %v1730
        %2062 = vmatprep.subr.bf16.mxu0 0
        %2063 = vmatpush2.bf16.msra.mxu0 %v1729
        %2064 = vmatprep.subr.bf16.mxu0 0
        %2065 = vmatpush2.bf16.msra.mxu0 %v1728
        %2066 = vmatprep.subr.bf16.mxu0 0
        %2067 = vmatpush2.bf16.msra.mxu0 %v1727
        %2068 = vmatprep.mubr.bf16.mxu0 %v1242
        %2069 = vmatmul.mubr.bf16.gmra.mxu0 %v1241
        %v2070 = vpop.f32.mrf.mxu0
        %v2071 = vadd.f32 %v2030, %v2070
        %v2072 = vpop.f32.mrf.mxu0
        %v2073 = vpop.f32.mrf.mxu0
        %v2074 = vadd.f32 %v2033, %v2073
        %v2075 = vpop.f32.mrf.mxu0
        %2076 = vdwg.mxu0
        %v2077 = vmax.f32 %v2071, 0.0
        %v2078 = vmax.f32 %v2074, 0.0
        %v2079 = vpack.c.bf16 %v2078, %v2077
        %v2080 = vld [vmem:[%s5] sm:$0xf]
        %v2081 = vld [vmem:[%s5 + $0x4] sm:$0xf]
        %v2082 = vld [vmem:[%s5 + $0x8] sm:$0xf]
        %v2083 = vld [vmem:[%s5 + $0xc] sm:$0xf]
        %v2084 = vld [vmem:[%s5 + $0x10] sm:$0xf]
        %v2085 = vld [vmem:[%s5 + $0x14] sm:$0xf]
        %v2086 = vld [vmem:[%s5 + $0x18] sm:$0xf]
        %v2087 = vld [vmem:[%s5 + $0x1c] sm:$0xf]
        %v2088 = vld [vmem:[%s5 + $0x20] sm:$0xf]
        %v2089 = vld [vmem:[%s5 + $0x24] sm:$0xf]
        %v2090 = vld [vmem:[%s5 + $0x28] sm:$0xf]
        %v2091 = vld [vmem:[%s5 + $0x2c] sm:$0xf]
        %v2092 = vld [vmem:[%s5 + $0x30] sm:$0xf]
        %v2093 = vld [vmem:[%s5 + $0x34] sm:$0xf]
        %v2094 = vld [vmem:[%s5 + $0x38] sm:$0xf]
        %v2095 = vld [vmem:[%s5 + $0x3c] sm:$0xf]
        %v2096 = vld [vmem:[%s6] sm:$0x1]
        %v2098 = vlaneseq
        %v2099 = vshrl.u32 %v2098, 7
        %v2100 = vsub.s32 0, %v2099
        %v2101 = vrot.slane %v2096, %v2100
        %v2119 = vunpack.c.l.b16 %v2080
        %v2120 = vunpack.c.l.b16 %v2081
        %v2121 = vunpack.c.l.b16 %v2082
        %v2122 = vunpack.c.l.b16 %v2083
        %v2123 = vunpack.c.l.b16 %v2084
        %v2124 = vunpack.c.l.b16 %v2085
        %v2125 = vunpack.c.l.b16 %v2086
        %v2126 = vunpack.c.l.b16 %v2087
        %v2127 = vunpack.c.l.b16 %v2088
        %v2128 = vunpack.c.l.b16 %v2089
        %v2129 = vunpack.c.l.b16 %v2090
        %v2130 = vunpack.c.l.b16 %v2091
        %v2131 = vunpack.c.l.b16 %v2092
        %v2132 = vunpack.c.l.b16 %v2093
        %v2133 = vunpack.c.l.b16 %v2094
        %v2134 = vunpack.c.l.b16 %v2095
        %v2135 = vpack.c.b16 %v2120, %v2119
        %v2136 = vpack.c.b16 %v2122, %v2121
        %v2137 = vpack.c.b16 %v2124, %v2123
        %v2138 = vpack.c.b16 %v2126, %v2125
        %v2139 = vpack.c.b16 %v2128, %v2127
        %v2140 = vpack.c.b16 %v2130, %v2129
        %v2141 = vpack.c.b16 %v2132, %v2131
        %v2142 = vpack.c.b16 %v2134, %v2133
        %2151 = vmatprep.subr.bf16.mxu0 0
        %2152 = vmatpush1.bf16.msra.mxu0 %v2142
        %2153 = vmatprep.subr.bf16.mxu0 0
        %2154 = vmatpush1.bf16.msra.mxu0 %v2141
        %2155 = vmatprep.subr.bf16.mxu0 0
        %2156 = vmatpush1.bf16.msra.mxu0 %v2140
        %2157 = vmatprep.subr.bf16.mxu0 0
        %2158 = vmatpush1.bf16.msra.mxu0 %v2139
        %2159 = vmatprep.subr.bf16.mxu0 0
        %2160 = vmatpush1.bf16.msra.mxu0 %v2138
        %2161 = vmatprep.subr.bf16.mxu0 0
        %2162 = vmatpush1.bf16.msra.mxu0 %v2137
        %2163 = vmatprep.subr.bf16.mxu0 0
        %2164 = vmatpush1.bf16.msra.mxu0 %v2136
        %2165 = vmatprep.subr.bf16.mxu0 0
        %2166 = vmatpush1.bf16.msra.mxu0 %v2135
        %2167 = vmatprep.subr.bf16.mxu0 0
        %2168 = vmatpush2.bf16.msra.mxu0 0
        %2169 = vmatprep.subr.bf16.mxu0 0
        %2170 = vmatpush2.bf16.msra.mxu0 0
        %2171 = vmatprep.subr.bf16.mxu0 0
        %2172 = vmatpush2.bf16.msra.mxu0 0
        %2173 = vmatprep.subr.bf16.mxu0 0
        %2174 = vmatpush2.bf16.msra.mxu0 0
        %2175 = vmatprep.subr.bf16.mxu0 0
        %2176 = vmatpush2.bf16.msra.mxu0 0
        %2177 = vmatprep.subr.bf16.mxu0 0
        %2178 = vmatpush2.bf16.msra.mxu0 0
        %2179 = vmatprep.subr.bf16.mxu0 0
        %2180 = vmatpush2.bf16.msra.mxu0 0
        %2181 = vmatprep.subr.bf16.mxu0 0
        %2182 = vmatpush2.bf16.msra.mxu0 0
        %2183 = vmatprep.mubr.bf16.mxu0 0
        %2184 = vmatmul.mubr.bf16.gmra.mxu0 %v2079
        %v2185 = vpop.f32.mrf.mxu0
        %v2186 = vadd.f32 %v2101, %v2185
        %v2187 = vpop.f32.mrf.mxu0
        %v2188 = vpop.f32.mrf.mxu0
        %v2189 = vadd.f32 %v2101, %v2188
        %v2190 = vpop.f32.mrf.mxu0
        %2191 = vdwg.mxu0
        %vm2192 = vcmask 392192
        %2193 = vst.msk [vmem:[%s333] sm:$0xff] %vm2192, %v2186
        %2194 = vst.msk [vmem:[%s333 + $0x8] sm:$0xff] %vm2192, %v2189
        %p2195 = scmp.lt.s32.totalorder %s21, 1
        %s2196 = scalar_select %p2195, %s21, 1
        %s2197 = smul.addr %s2196, 8
        %s2198 = smul.addr %s2197, 8
        %s2199 = scalar_lea.vmem %s7, %s2198
        %p2200 = scmp.lt.s32.totalorder %s21, 1
        %s2201 = scalar_select %p2200, %s21, 1
        %s2202 = smul.addr %s2201, 2
        %s2203 = smul.addr %s2202, 8
        %s2204 = scalar_lea.vmem %s8, %s2203
        // Predicated region
        $region53: #{m0_pallas.1} parent=47 // pred_check
          %p2205 = pneg %p191
        $region54: #{m0_pallas.1} parent=47 // pred_check_branch
          %2207 = sbr.rel (%p2205) target = $region56
        $region55: #{m0_pallas.1} parent=47 // pred_region
          _
        $region56: #{m0_pallas.1} parent=47 // pred_fallthru
          _
        // Predicated region
        $region57: #{m0_pallas.1} parent=47 // pred_check
          %p2208 = pneg %p217
        $region58: #{m0_pallas.1} parent=47 // pred_check_branch
          %2210 = sbr.rel (%p2208) target = $region60
        $region59: #{m0_pallas.1} parent=47 // pred_region
          _
        $region60: #{m0_pallas.1} parent=47 // pred_fallthru
          _
      $region48: #{m0_pallas.1} parent=5 // pred_fallthru
        _
      %p2211 = scmp.le.s32.totalorder 2, %s16
      // Predicated region
      $region61: #{m0_pallas.1} parent=5 // pred_check
        %p2212 = pneg %p2211
      $region62: #{m0_pallas.1} parent=5 // pred_check_branch
        %2214 = sbr.rel (%p2212) target = $region64
      $region63: #{m0_pallas.1} parent=5 // pred_region
        %s2215 = ssub.s32 %s16, 2
        // Predicated region
        $region65: #{m0_pallas.1} parent=63 // pred_check
          %p2216 = pneg %p197
        $region66: #{m0_pallas.1} parent=63 // pred_check_branch
          %2218 = sbr.rel (%p2216) target = $region68
        $region67: #{m0_pallas.1} parent=63 // pred_region
          %p2219 = scmp.lt.s32.totalorder %s22, 1
          %s2220 = scalar_select %p2219, %s22, 1
          %s2221 = smul.addr %s2220, 8
          %s2222 = smul.addr %s2221, 8
          %s2223 = scalar_lea.vmem %s7, %s2222
        $region68: #{m0_pallas.1} parent=63 // pred_fallthru
          _
        // Predicated region
        $region69: #{m0_pallas.1} parent=63 // pred_check
          %p2224 = pneg %p223
        $region70: #{m0_pallas.1} parent=63 // pred_check_branch
          %2226 = sbr.rel (%p2224) target = $region72
        $region71: #{m0_pallas.1} parent=63 // pred_region
          %p2227 = scmp.lt.s32.totalorder %s22, 1
          %s2228 = scalar_select %p2227, %s22, 1
          %s2229 = smul.addr %s2228, 2
          %s2230 = smul.addr %s2229, 8
          %s2231 = scalar_lea.vmem %s8, %s2230
        $region72: #{m0_pallas.1} parent=63 // pred_fallthru
          _
      $region64: #{m0_pallas.1} parent=5 // pred_fallthru
        _
    $region6: #{m0_pallas.1} parent=1 // loop_footer
      %s20 = sadd.s32 1, %s16
    $region7: #{m0_pallas.1} parent=1 // loop_footer_branch
      %15 = sbr.rel target = $region3
    $region8: #{m0_pallas.1} parent=1 // loop_exit
      _
    %2232 = vsyncpa [#allocation5], 1
    %s2233 = scalar_lea.sflag [#allocation5], 1
    %2234 = vsyncpa %s2233, 1

</llo_original>
